<compile_context>
chip_gen: v7x
topology: tpu7x:2x2x1
jax: 0.10.0
libtpu: 0.0.40
codegen_flags: <defaults>
</compile_context>

<pallas_src>
import jax
import jax.numpy as jnp
from jax.experimental import pallas as pl
from jax.experimental.pallas import tpu as pltpu

BN_EPS = 1e-5


# ----------------------------- Pallas kernel ------------------------------ #
def _make_cin_kernel(levels: int, n_pad: int, nb_pad: int, f: int, hidden: int,
                     ns):
    """Kernel body covering all cochain levels (unrolled, single invocation).

    Packed-weight row offsets inside the [2f + 4*hidden, hidden] slab
    (all multiples of 16 so bf16 slices stay sublane-tile aligned):
    """
    o_w1u = 0                       # update_up_nn Linear1      (f , hidden)
    o_w2u = f                       # update_up_nn Linear2      (hidden, hidden)
    o_w1b = f + hidden              # update_boundaries Linear1 (f , hidden)
    o_w2b = 2 * f + hidden          # update_boundaries Linear2 (hidden, hidden)
    o_wct = 2 * f + 2 * hidden      # combine_nn Linear, top half   (hidden, hidden)
    o_wcb = 2 * f + 3 * hidden      # combine_nn Linear, bottom half(hidden, hidden)

    def kernel(bcat_ref,   # bf16 [L, nb_pad + n_pad, f]   [boundary attrs ; x]
               aup_ref,    # bf16 [L, n_pad, n_pad]         (diag = 1 + eps1)
               abnd_ref,   # bf16 [L, n_pad, nb_pad+n_pad]  [A_bnd | (1+eps2) I]
               w_ref,      # bf16 [L, 2f+4h, hidden]        BN-folded weights
               s_ref,      # f32  [L, 8, hidden]            folded bias/BN shifts
               out_ref):   # f32  [L, n_pad, hidden]
        row = jax.lax.broadcasted_iota(jnp.int32, (n_pad, 1), 0)

        def lin_relu(l, h, r0, k, srow):
            # bias and BatchNorm already folded into W'/shift' on the host.
            z = jnp.dot(h.astype(jnp.bfloat16), w_ref[l, r0:r0 + k, :],
                        preferred_element_type=jnp.float32)
            return jnp.maximum(z + s_ref[l, srow:srow + 1, :], 0.0)

        # Fully unrolled over levels so the scheduler can interleave the three
        # independent matmul chains (hides MXU fill/drain at M~32).
        for l in range(levels):
            x = bcat_ref[l, nb_pad:nb_pad + n_pad, :]

            # Message passing on the MXU.  GIN-style self terms are pre-folded:
            #  - (1+eps1)*x lives on A_up's diagonal,
            #  - (1+eps2)*x lives in the extra identity columns of A_bnd_cat.
            out_up = jnp.dot(aup_ref[l], x, preferred_element_type=jnp.float32)
            out_bnd = jnp.dot(abnd_ref[l], bcat_ref[l],
                              preferred_element_type=jnp.float32)

            # update_up_nn / update_boundaries_nn (Linear+BN+ReLU, folded).
            h_up = lin_relu(l, out_up, o_w1u, f, 0)
            h_up = lin_relu(l, h_up, o_w2u, hidden, 1)
            h_bnd = lin_relu(l, out_bnd, o_w1b, f, 2)
            h_bnd = lin_relu(l, h_bnd, o_w2b, hidden, 3)

            # combine_nn(concat([h_up, h_bnd], -1)) as two K=hidden dots
            # accumulated in f32 (avoids the lane-concat materialization).
            zc = jnp.dot(h_up.astype(jnp.bfloat16),
                         w_ref[l, o_wct:o_wct + hidden, :],
                         preferred_element_type=jnp.float32)
            zc = zc + jnp.dot(h_bnd.astype(jnp.bfloat16),
                              w_ref[l, o_wcb:o_wcb + hidden, :],
                              preferred_element_type=jnp.float32)
            out = jnp.maximum(zc + s_ref[l, 4:5, :], 0.0)
            # Zero the padded rows so the full slab is clean for consumers.
            out_ref[l] = jnp.where(row < ns[l], out, 0.0)

    return kernel


# --------------------------- host-side wrapper ----------------------------- #
def _round_up(v, m):
    return ((v + m - 1) // m) * m


def _fold_linear_bn(w, b, bn):
    """Fold Linear bias + eval-mode BatchNorm into (W', shift')."""
    gamma, beta, mean, var = bn
    scale = gamma * jax.lax.rsqrt(var + BN_EPS)
    shift = beta - mean * scale
    return w * scale[None, :], b * scale + shift


def _pack_level_params(p, hidden):
    """Pack one level's params into a [2f+4h, h] bf16 weight slab and an
    [8, h] f32 shift slab (one shift row per stage)."""
    w1u, s1u = _fold_linear_bn(p["w1u"], p["b1u"], p["bn1u"])
    w2u, s2u = _fold_linear_bn(p["w2u"], p["b2u"], p["bn2u"])
    w1b, s1b = _fold_linear_bn(p["w1b"], p["b1b"], p["bn1b"])
    w2b, s2b = _fold_linear_bn(p["w2b"], p["b2b"], p["bn2b"])
    wc, sc = _fold_linear_bn(p["wc"], p["bc"], p["bnc"])

    w_slab = jnp.concatenate(
        [w1u, w2u, w1b, w2b, wc[:hidden, :], wc[hidden:, :]],
        axis=0).astype(jnp.bfloat16)                       # [2f + 4h, h]
    s_slab = jnp.concatenate(
        [jnp.stack([s1u, s2u, s1b, s2b, sc], axis=0),
         jnp.zeros((3, hidden), jnp.float32)], axis=0)     # [8, h]
    return w_slab, s_slab


def prepare_fused_inputs(cochain_inputs, level_params, eps1, eps2, hidden):
    """Pad, fold eps / bias / BN, and stack all cochain levels."""
    f = cochain_inputs[0][0].shape[1]
    assert f % 16 == 0 and hidden % 16 == 0, "f / hidden must be multiples of 16"
    ns = [x.shape[0] for x, _, _, _ in cochain_inputs]
    nbs = [b.shape[0] for _, b, _, _ in cochain_inputs]
    n_pad = _round_up(max(ns), 16)
    nb_pad = _round_up(max(nbs), 16)

    bcats, aups, abnds, ws, ss = [], [], [], [], []
    for (x, b_attr, a_up, a_bnd), params in zip(cochain_inputs, level_params):
        n, nb = x.shape[0], b_attr.shape[0]

        # A_up with the (1 + eps1) * x self term folded onto the diagonal.
        aup_p = jnp.zeros((n_pad, n_pad), jnp.float32)
        aup_p = aup_p.at[:n, :n].set(
            a_up + (1.0 + eps1) * jnp.eye(n, dtype=jnp.float32))

        # [A_bnd | (1 + eps2) I] so that  A_bnd_cat @ [b_attr ; x]
        # = out_boundaries + (1 + eps2) * x  in a single matmul.
        abnd_p = jnp.zeros((n_pad, nb_pad + n_pad), jnp.float32)
        abnd_p = abnd_p.at[:n, :nb].set(a_bnd)
        abnd_p = abnd_p.at[:n, nb_pad:nb_pad + n].set(
            (1.0 + eps2) * jnp.eye(n, dtype=jnp.float32))

        # [boundary attrs ; x] stacked along rows (x is sliced back in-kernel).
        bcat_p = jnp.zeros((nb_pad + n_pad, f), jnp.float32)
        bcat_p = bcat_p.at[:nb, :].set(b_attr)
        bcat_p = bcat_p.at[nb_pad:nb_pad + n, :].set(x)

        w_slab, s_slab = _pack_level_params(params, hidden)
        bcats.append(bcat_p)
        aups.append(aup_p)
        abnds.append(abnd_p)
        ws.append(w_slab)
        ss.append(s_slab)

    return dict(
        bcat=jnp.stack(bcats).astype(jnp.bfloat16),   # [L, nb_pad+n_pad, f]
        aup=jnp.stack(aups).astype(jnp.bfloat16),     # [L, n_pad, n_pad]
        abnd=jnp.stack(abnds).astype(jnp.bfloat16),   # [L, n_pad, nb_pad+n_pad]
        w=jnp.stack(ws),                              # [L, 2f+4h, h] bf16
        s=jnp.stack(ss),                              # [L, 8, h]     f32
        ns=tuple(ns), f=f, hidden=hidden, n_pad=n_pad, nb_pad=nb_pad)


def fused_cin_pallas(prep):
    """One pallas_call, no grid: all levels unrolled in a single body."""
    levels = prep["bcat"].shape[0]
    n_pad, nb_pad = prep["n_pad"], prep["nb_pad"]
    f, hidden = prep["f"], prep["hidden"]
    kernel = _make_cin_kernel(levels, n_pad, nb_pad, f, hidden, prep["ns"])

    # Whole-array VMEM residency: total working set is < 100 KB, far under the
    # scoped VMEM limit on every TPU generation, so no tiling / pipelining.
    vmem = lambda: pl.BlockSpec(memory_space=pltpu.MemorySpace.VMEM)
    return pl.pallas_call(
        kernel,
        out_shape=jax.ShapeDtypeStruct((levels, n_pad, hidden), jnp.float32),
        in_specs=[vmem() for _ in range(5)],
        out_specs=vmem(),
    )(prep["bcat"], prep["aup"], prep["abnd"], prep["w"], prep["s"])


def sparse_cin_conv_forward(cochain_inputs, level_params, eps1=0.0, eps2=0.0,
                            *, hidden):
    """SparseCINConv.forward: all cochain levels in a single fused kernel.

    Returns (per_level_outputs, padded_slab, prepared_inputs).
    """
    prep = prepare_fused_inputs(cochain_inputs, level_params, eps1, eps2, hidden)
    padded = fused_cin_pallas(prep)
    outs = [padded[d, :n, :hidden] for d, n in enumerate(prep["ns"])]
    return outs, padded, prep


# --------------------------- pure-JAX reference ----------------------------- #
def reference_forward(prep):
    """Same math on the same bf16-rounded operands, in plain JAX (f32 matmuls)."""
    f, hidden = prep["f"], prep["hidden"]
    n_pad, nb_pad = prep["n_pad"], prep["nb_pad"]
    f32 = jnp.float32
    bcat = prep["bcat"].astype(f32)
    aup = prep["aup"].astype(f32)
    abnd = prep["abnd"].astype(f32)
    W = prep["w"].astype(f32)
    S = prep["s"]

    o_w1u, o_w2u = 0, f
    o_w1b, o_w2b = f + hidden, 2 * f + hidden
    o_wct, o_wcb = 2 * f + 2 * hidden, 2 * f + 3 * hidden

    def stage(h, r0, k, srow):
        hb = h.astype(jnp.bfloat16).astype(f32)
        z = jnp.einsum("lnk,lkh->lnh", hb, W[:, r0:r0 + k, :]) \
            + S[:, srow:srow + 1, :]
        return jnp.maximum(z, 0.0)

    x = bcat[:, nb_pad:nb_pad + n_pad, :]
    out_up = jnp.einsum("lnm,lmf->lnf", aup, x)
    out_bnd = jnp.einsum("lnm,lmf->lnf", abnd, bcat)
    h_up = stage(out_up, o_w1u, f, 0)
    h_up = stage(h_up, o_w2u, hidden, 1)
    h_bnd = stage(out_bnd, o_w1b, f, 2)
    h_bnd = stage(h_bnd, o_w2b, hidden, 3)
    hub = h_up.astype(jnp.bfloat16).astype(f32)
    hbb = h_bnd.astype(jnp.bfloat16).astype(f32)
    zc = (jnp.einsum("lnk,lkh->lnh", hub, W[:, o_wct:o_wct + hidden, :]) +
          jnp.einsum("lnk,lkh->lnh", hbb, W[:, o_wcb:o_wcb + hidden, :]) +
          S[:, 4:5, :])
    out = jnp.maximum(zc, 0.0)
    ns = jnp.asarray(prep["ns"])[:, None, None]
    rows = jnp.arange(n_pad)[None, :, None]
    return jnp.where(rows < ns, out, 0.0)


# ------------------------- deterministic parameters ------------------------ #
def _linear_init(key, fan_in, fan_out):
    kw, kb = jax.random.split(key)
    bound = 1.0 / float(fan_in) ** 0.5
    w = jax.random.uniform(kw, (fan_in, fan_out), jnp.float32, -bound, bound)
    b = jax.random.uniform(kb, (fan_out,), jnp.float32, -bound, bound)
    return w, b


def _bn_init(key, dim):
    kg, kb, km, kv = jax.random.split(key, 4)
    gamma = jax.random.uniform(kg, (dim,), jnp.float32, 0.5, 1.5)
    beta = 0.1 * jax.random.normal(kb, (dim,), jnp.float32)
    mean = 0.1 * jax.random.normal(km, (dim,), jnp.float32)
    var = jax.random.uniform(kv, (dim,), jnp.float32, 0.5, 1.5)
    return gamma, beta, mean, var


def init_level_params(key, layer_dim, hidden):
    ks = jax.random.split(key, 10)
    w1u, b1u = _linear_init(ks[0], layer_dim, hidden)   # update_up_nn
    w2u, b2u = _linear_init(ks[1], hidden, hidden)
    w1b, b1b = _linear_init(ks[2], layer_dim, hidden)   # update_boundaries_nn
    w2b, b2b = _linear_init(ks[3], hidden, hidden)
    wc, bc = _linear_init(ks[4], 2 * hidden, hidden)    # combine_nn
    return dict(
        w1u=w1u, b1u=b1u, bn1u=_bn_init(ks[5], hidden),
        w2u=w2u, b2u=b2u, bn2u=_bn_init(ks[6], hidden),
        w1b=w1b, b1b=b1b, bn1b=_bn_init(ks[7], hidden),
        w2b=w2b, b2b=b2b, bn2b=_bn_init(ks[8], hidden),
        wc=wc, bc=bc, bnc=_bn_init(ks[9], hidden),
    )


# ----------------------------------- main ---------------------------------- #
if __name__ == "__main__":
    key = jax.random.PRNGKey(0)
    layer_dim = 32      # feature dim of every cochain level (up/boundary msg size)
    hidden = 32
    max_dim = 2
    num_cells = [16, 24, 12]          # #cells of dim 0, 1, 2

    k_feat, k_adj, k_par = jax.random.split(key, 3)

    # Cell features per level.
    feat_keys = jax.random.split(k_feat, max_dim + 1)
    xs = [jax.random.normal(feat_keys[d], (num_cells[d], layer_dim), jnp.float32)
          for d in range(max_dim + 1)]

    # Dense adjacency structure (synthetic complex).
    adj_keys = jax.random.split(k_adj, 2 * (max_dim + 1))
    cochain_inputs = []
    for d in range(max_dim + 1):
        n = num_cells[d]
        a_up = (jax.random.uniform(adj_keys[2 * d], (n, n)) < 0.3).astype(jnp.float32)
        a_up = a_up * (1.0 - jnp.eye(n, dtype=jnp.float32))
        if d == 0:
            # 0-cells have no boundaries -> zero incidence and zero attrs,
            # matching out_boundaries == (1+eps2)*x before the update NN.
            a_bnd = jnp.zeros((n, n), jnp.float32)
            b_attr = jnp.zeros((n, layer_dim), jnp.float32)
        else:
            nb = num_cells[d - 1]
            a_bnd = (jax.random.uniform(adj_keys[2 * d + 1], (n, nb)) < 0.4
                     ).astype(jnp.float32)
            b_attr = xs[d - 1]
        cochain_inputs.append((xs[d], b_attr, a_up, a_bnd))

    # Parameters (one SparseCINCochainConv per dim level).
    par_keys = jax.random.split(k_par, max_dim + 1)
    level_params = [init_level_params(par_keys[d], layer_dim, hidden)
                    for d in range(max_dim + 1)]

    outs, padded, prep = sparse_cin_conv_forward(
        cochain_inputs, level_params, eps1=0.0, eps2=0.0, hidden=hidden)
    padded = jax.block_until_ready(padded)
    outs = [jax.block_until_ready(o) for o in outs]

    # Correctness vs. pure-JAX reference on the same bf16-rounded operands.
    ref = jax.block_until_ready(reference_forward(prep))
    assert bool(jnp.allclose(padded, ref, rtol=1e-2, atol=1e-2))

    expected = [(num_cells[d], hidden) for d in range(max_dim + 1)]
    assert [tuple(o.shape) for o in outs] == expected
    assert all(bool(jnp.isfinite(o).all()) for o in outs)
    print("KERNEL_OK")
</pallas_src>

<mosaic_0001>
module attributes {stable_mosaic.version = 11 : i64} {
  func.func @kernel(%arg0: memref<3x64x32xbf16, #tpu.memory_space<vmem>>, %arg1: memref<3x32x32xbf16, #tpu.memory_space<vmem>>, %arg2: memref<3x32x64xbf16, #tpu.memory_space<vmem>>, %arg3: memref<3x192x32xbf16, #tpu.memory_space<vmem>>, %arg4: memref<3x8x32xf32, #tpu.memory_space<vmem>>, %arg5: memref<3x32x32xf32, #tpu.memory_space<vmem>>) attributes {dimension_semantics = [], scalar_prefetch = 0 : i64, scratch_operands = 0 : i64, tpu.core_type = #tpu.core_type<tc>} {
    %0 = tpu.iota {dimensions = array<i32: 0>} : vector<32x1xi32>
    %c0 = arith.constant 0 : index
    %c32 = arith.constant 32 : index
    %c0_0 = arith.constant 0 : index
    %1 = vector.load %arg0[%c0, %c32, %c0_0] : memref<3x64x32xbf16, #tpu.memory_space<vmem>>, vector<1x32x32xbf16>
    %2 = vector.shape_cast %1 : vector<1x32x32xbf16> to vector<32x32xbf16>
    %c0_1 = arith.constant 0 : index
    %c0_2 = arith.constant 0 : index
    %c0_3 = arith.constant 0 : index
    %3 = vector.load %arg1[%c0_1, %c0_2, %c0_3] : memref<3x32x32xbf16, #tpu.memory_space<vmem>>, vector<1x32x32xbf16>
    %4 = vector.shape_cast %3 : vector<1x32x32xbf16> to vector<32x32xbf16>
    %cst = arith.constant dense<0.000000e+00> : vector<32x32xf32>
    %5 = tpu.matmul %4, %2, %cst {dimension_numbers = #tpu.dot_dimension_numbers<[1], [0], [0], [1], [0, 0, 1, 1], [], []>} : vector<32x32xbf16>, vector<32x32xbf16>, vector<32x32xf32> -> vector<32x32xf32>
    %c0_4 = arith.constant 0 : index
    %c0_5 = arith.constant 0 : index
    %c0_6 = arith.constant 0 : index
    %6 = vector.load %arg2[%c0_4, %c0_5, %c0_6] : memref<3x32x64xbf16, #tpu.memory_space<vmem>>, vector<1x32x64xbf16>
    %7 = vector.shape_cast %6 : vector<1x32x64xbf16> to vector<32x64xbf16>
    %c0_7 = arith.constant 0 : index
    %c0_8 = arith.constant 0 : index
    %c0_9 = arith.constant 0 : index
    %8 = vector.load %arg0[%c0_7, %c0_8, %c0_9] : memref<3x64x32xbf16, #tpu.memory_space<vmem>>, vector<1x64x32xbf16>
    %9 = vector.shape_cast %8 : vector<1x64x32xbf16> to vector<64x32xbf16>
    %cst_10 = arith.constant dense<0.000000e+00> : vector<32x32xf32>
    %10 = tpu.matmul %7, %9, %cst_10 {dimension_numbers = #tpu.dot_dimension_numbers<[1], [0], [0], [1], [0, 0, 1, 1], [], []>} : vector<32x64xbf16>, vector<64x32xbf16>, vector<32x32xf32> -> vector<32x32xf32>
    %11 = arith.truncf %5 : vector<32x32xf32> to vector<32x32xbf16>
    %c0_11 = arith.constant 0 : index
    %c0_12 = arith.constant 0 : index
    %c0_13 = arith.constant 0 : index
    %12 = vector.load %arg3[%c0_11, %c0_12, %c0_13] : memref<3x192x32xbf16, #tpu.memory_space<vmem>>, vector<1x32x32xbf16>
    %13 = vector.shape_cast %12 : vector<1x32x32xbf16> to vector<32x32xbf16>
    %cst_14 = arith.constant dense<0.000000e+00> : vector<32x32xf32>
    %14 = tpu.matmul %11, %13, %cst_14 {dimension_numbers = #tpu.dot_dimension_numbers<[1], [0], [0], [1], [0, 0, 1, 1], [], []>} : vector<32x32xbf16>, vector<32x32xbf16>, vector<32x32xf32> -> vector<32x32xf32>
    %c0_15 = arith.constant 0 : index
    %c0_16 = arith.constant 0 : index
    %c0_17 = arith.constant 0 : index
    %15 = vector.load %arg4[%c0_15, %c0_16, %c0_17] : memref<3x8x32xf32, #tpu.memory_space<vmem>>, vector<1x1x32xf32>
    %16 = vector.shape_cast %15 : vector<1x1x32xf32> to vector<1x32xf32>
    %17 = vector.broadcast %16 : vector<1x32xf32> to vector<32x32xf32>
    %18 = arith.addf %14, %17 : vector<32x32xf32>
    %cst_18 = arith.constant 0.000000e+00 : f32
    %19 = vector.broadcast %cst_18 : f32 to vector<32x32xf32>
    %20 = arith.maximumf %18, %19 : vector<32x32xf32>
    %21 = arith.truncf %20 : vector<32x32xf32> to vector<32x32xbf16>
    %c0_19 = arith.constant 0 : index
    %c32_20 = arith.constant 32 : index
    %c0_21 = arith.constant 0 : index
    %22 = vector.load %arg3[%c0_19, %c32_20, %c0_21] : memref<3x192x32xbf16, #tpu.memory_space<vmem>>, vector<1x32x32xbf16>
    %23 = vector.shape_cast %22 : vector<1x32x32xbf16> to vector<32x32xbf16>
    %cst_22 = arith.constant dense<0.000000e+00> : vector<32x32xf32>
    %24 = tpu.matmul %21, %23, %cst_22 {dimension_numbers = #tpu.dot_dimension_numbers<[1], [0], [0], [1], [0, 0, 1, 1], [], []>} : vector<32x32xbf16>, vector<32x32xbf16>, vector<32x32xf32> -> vector<32x32xf32>
    %c0_23 = arith.constant 0 : index
    %c1 = arith.constant 1 : index
    %c0_24 = arith.constant 0 : index
    %25 = vector.load %arg4[%c0_23, %c1, %c0_24] : memref<3x8x32xf32, #tpu.memory_space<vmem>>, vector<1x1x32xf32>
    %26 = vector.shape_cast %25 : vector<1x1x32xf32> to vector<1x32xf32>
    %27 = vector.broadcast %26 : vector<1x32xf32> to vector<32x32xf32>
    %28 = arith.addf %24, %27 : vector<32x32xf32>
    %cst_25 = arith.constant 0.000000e+00 : f32
    %29 = vector.broadcast %cst_25 : f32 to vector<32x32xf32>
    %30 = arith.maximumf %28, %29 : vector<32x32xf32>
    %31 = arith.truncf %10 : vector<32x32xf32> to vector<32x32xbf16>
    %c0_26 = arith.constant 0 : index
    %c64 = arith.constant 64 : index
    %c0_27 = arith.constant 0 : index
    %32 = vector.load %arg3[%c0_26, %c64, %c0_27] : memref<3x192x32xbf16, #tpu.memory_space<vmem>>, vector<1x32x32xbf16>
    %33 = vector.shape_cast %32 : vector<1x32x32xbf16> to vector<32x32xbf16>
    %cst_28 = arith.constant dense<0.000000e+00> : vector<32x32xf32>
    %34 = tpu.matmul %31, %33, %cst_28 {dimension_numbers = #tpu.dot_dimension_numbers<[1], [0], [0], [1], [0, 0, 1, 1], [], []>} : vector<32x32xbf16>, vector<32x32xbf16>, vector<32x32xf32> -> vector<32x32xf32>
    %c0_29 = arith.constant 0 : index
    %c2 = arith.constant 2 : index
    %c0_30 = arith.constant 0 : index
    %35 = vector.load %arg4[%c0_29, %c2, %c0_30] : memref<3x8x32xf32, #tpu.memory_space<vmem>>, vector<1x1x32xf32>
    %36 = vector.shape_cast %35 : vector<1x1x32xf32> to vector<1x32xf32>
    %37 = vector.broadcast %36 : vector<1x32xf32> to vector<32x32xf32>
    %38 = arith.addf %34, %37 : vector<32x32xf32>
    %cst_31 = arith.constant 0.000000e+00 : f32
    %39 = vector.broadcast %cst_31 : f32 to vector<32x32xf32>
    %40 = arith.maximumf %38, %39 : vector<32x32xf32>
    %41 = arith.truncf %40 : vector<32x32xf32> to vector<32x32xbf16>
    %c0_32 = arith.constant 0 : index
    %c96 = arith.constant 96 : index
    %c0_33 = arith.constant 0 : index
    %42 = vector.load %arg3[%c0_32, %c96, %c0_33] : memref<3x192x32xbf16, #tpu.memory_space<vmem>>, vector<1x32x32xbf16>
    %43 = vector.shape_cast %42 : vector<1x32x32xbf16> to vector<32x32xbf16>
    %cst_34 = arith.constant dense<0.000000e+00> : vector<32x32xf32>
    %44 = tpu.matmul %41, %43, %cst_34 {dimension_numbers = #tpu.dot_dimension_numbers<[1], [0], [0], [1], [0, 0, 1, 1], [], []>} : vector<32x32xbf16>, vector<32x32xbf16>, vector<32x32xf32> -> vector<32x32xf32>
    %c0_35 = arith.constant 0 : index
    %c3 = arith.constant 3 : index
    %c0_36 = arith.constant 0 : index
    %45 = vector.load %arg4[%c0_35, %c3, %c0_36] : memref<3x8x32xf32, #tpu.memory_space<vmem>>, vector<1x1x32xf32>
    %46 = vector.shape_cast %45 : vector<1x1x32xf32> to vector<1x32xf32>
    %47 = vector.broadcast %46 : vector<1x32xf32> to vector<32x32xf32>
    %48 = arith.addf %44, %47 : vector<32x32xf32>
    %cst_37 = arith.constant 0.000000e+00 : f32
    %49 = vector.broadcast %cst_37 : f32 to vector<32x32xf32>
    %50 = arith.maximumf %48, %49 : vector<32x32xf32>
    %51 = arith.truncf %30 : vector<32x32xf32> to vector<32x32xbf16>
    %c0_38 = arith.constant 0 : index
    %c128 = arith.constant 128 : index
    %c0_39 = arith.constant 0 : index
    %52 = vector.load %arg3[%c0_38, %c128, %c0_39] : memref<3x192x32xbf16, #tpu.memory_space<vmem>>, vector<1x32x32xbf16>
    %53 = vector.shape_cast %52 : vector<1x32x32xbf16> to vector<32x32xbf16>
    %cst_40 = arith.constant dense<0.000000e+00> : vector<32x32xf32>
    %54 = tpu.matmul %51, %53, %cst_40 {dimension_numbers = #tpu.dot_dimension_numbers<[1], [0], [0], [1], [0, 0, 1, 1], [], []>} : vector<32x32xbf16>, vector<32x32xbf16>, vector<32x32xf32> -> vector<32x32xf32>
    %55 = arith.truncf %50 : vector<32x32xf32> to vector<32x32xbf16>
    %c0_41 = arith.constant 0 : index
    %c160 = arith.constant 160 : index
    %c0_42 = arith.constant 0 : index
    %56 = vector.load %arg3[%c0_41, %c160, %c0_42] : memref<3x192x32xbf16, #tpu.memory_space<vmem>>, vector<1x32x32xbf16>
    %57 = vector.shape_cast %56 : vector<1x32x32xbf16> to vector<32x32xbf16>
    %cst_43 = arith.constant dense<0.000000e+00> : vector<32x32xf32>
    %58 = tpu.matmul %55, %57, %cst_43 {dimension_numbers = #tpu.dot_dimension_numbers<[1], [0], [0], [1], [0, 0, 1, 1], [], []>} : vector<32x32xbf16>, vector<32x32xbf16>, vector<32x32xf32> -> vector<32x32xf32>
    %59 = arith.addf %54, %58 : vector<32x32xf32>
    %c0_44 = arith.constant 0 : index
    %c4 = arith.constant 4 : index
    %c0_45 = arith.constant 0 : index
    %60 = vector.load %arg4[%c0_44, %c4, %c0_45] : memref<3x8x32xf32, #tpu.memory_space<vmem>>, vector<1x1x32xf32>
    %61 = vector.shape_cast %60 : vector<1x1x32xf32> to vector<1x32xf32>
    %62 = vector.broadcast %61 : vector<1x32xf32> to vector<32x32xf32>
    %63 = arith.addf %59, %62 : vector<32x32xf32>
    %cst_46 = arith.constant 0.000000e+00 : f32
    %64 = vector.broadcast %cst_46 : f32 to vector<32x32xf32>
    %65 = arith.maximumf %63, %64 : vector<32x32xf32>
    %c16_i32 = arith.constant 16 : i32
    %66 = vector.broadcast %c16_i32 : i32 to vector<32x1xi32>
    %67 = arith.cmpi slt, %0, %66 : vector<32x1xi32>
    %cst_47 = arith.constant 0.000000e+00 : f32
    %68 = vector.shape_cast %67 : vector<32x1xi1> to vector<32x1xi1>
    %69 = vector.broadcast %68 : vector<32x1xi1> to vector<32x32xi1>
    %70 = vector.broadcast %cst_47 : f32 to vector<32x32xf32>
    %71 = arith.select %69, %65, %70 : vector<32x32xi1>, vector<32x32xf32>
    %c0_48 = arith.constant 0 : index
    %c0_49 = arith.constant 0 : index
    %c0_50 = arith.constant 0 : index
    %72 = vector.load %arg5[%c0_48, %c0_49, %c0_50] : memref<3x32x32xf32, #tpu.memory_space<vmem>>, vector<1x32x32xf32>
    %73 = vector.shape_cast %72 : vector<1x32x32xf32> to vector<32x32xf32>
    %74 = vector.shape_cast %71 : vector<32x32xf32> to vector<1x32x32xf32>
    tpu.vector_store %arg5[%c0_48, %c0_49, %c0_50], %74 {strides = array<i32>} : memref<3x32x32xf32, #tpu.memory_space<vmem>>, vector<1x32x32xf32>,
    %c1_51 = arith.constant 1 : index
    %c32_52 = arith.constant 32 : index
    %c0_53 = arith.constant 0 : index
    %75 = vector.load %arg0[%c1_51, %c32_52, %c0_53] : memref<3x64x32xbf16, #tpu.memory_space<vmem>>, vector<1x32x32xbf16>
    %76 = vector.shape_cast %75 : vector<1x32x32xbf16> to vector<32x32xbf16>
    %c1_54 = arith.constant 1 : index
    %c0_55 = arith.constant 0 : index
    %c0_56 = arith.constant 0 : index
    %77 = vector.load %arg1[%c1_54, %c0_55, %c0_56] : memref<3x32x32xbf16, #tpu.memory_space<vmem>>, vector<1x32x32xbf16>
    %78 = vector.shape_cast %77 : vector<1x32x32xbf16> to vector<32x32xbf16>
    %cst_57 = arith.constant dense<0.000000e+00> : vector<32x32xf32>
    %79 = tpu.matmul %78, %76, %cst_57 {dimension_numbers = #tpu.dot_dimension_numbers<[1], [0], [0], [1], [0, 0, 1, 1], [], []>} : vector<32x32xbf16>, vector<32x32xbf16>, vector<32x32xf32> -> vector<32x32xf32>
    %c1_58 = arith.constant 1 : index
    %c0_59 = arith.constant 0 : index
    %c0_60 = arith.constant 0 : index
    %80 = vector.load %arg2[%c1_58, %c0_59, %c0_60] : memref<3x32x64xbf16, #tpu.memory_space<vmem>>, vector<1x32x64xbf16>
    %81 = vector.shape_cast %80 : vector<1x32x64xbf16> to vector<32x64xbf16>
    %c1_61 = arith.constant 1 : index
    %c0_62 = arith.constant 0 : index
    %c0_63 = arith.constant 0 : index
    %82 = vector.load %arg0[%c1_61, %c0_62, %c0_63] : memref<3x64x32xbf16, #tpu.memory_space<vmem>>, vector<1x64x32xbf16>
    %83 = vector.shape_cast %82 : vector<1x64x32xbf16> to vector<64x32xbf16>
    %cst_64 = arith.constant dense<0.000000e+00> : vector<32x32xf32>
    %84 = tpu.matmul %81, %83, %cst_64 {dimension_numbers = #tpu.dot_dimension_numbers<[1], [0], [0], [1], [0, 0, 1, 1], [], []>} : vector<32x64xbf16>, vector<64x32xbf16>, vector<32x32xf32> -> vector<32x32xf32>
    %85 = arith.truncf %79 : vector<32x32xf32> to vector<32x32xbf16>
    %c1_65 = arith.constant 1 : index
    %c0_66 = arith.constant 0 : index
    %c0_67 = arith.constant 0 : index
    %86 = vector.load %arg3[%c1_65, %c0_66, %c0_67] : memref<3x192x32xbf16, #tpu.memory_space<vmem>>, vector<1x32x32xbf16>
    %87 = vector.shape_cast %86 : vector<1x32x32xbf16> to vector<32x32xbf16>
    %cst_68 = arith.constant dense<0.000000e+00> : vector<32x32xf32>
    %88 = tpu.matmul %85, %87, %cst_68 {dimension_numbers = #tpu.dot_dimension_numbers<[1], [0], [0], [1], [0, 0, 1, 1], [], []>} : vector<32x32xbf16>, vector<32x32xbf16>, vector<32x32xf32> -> vector<32x32xf32>
    %c1_69 = arith.constant 1 : index
    %c0_70 = arith.constant 0 : index
    %c0_71 = arith.constant 0 : index
    %89 = vector.load %arg4[%c1_69, %c0_70, %c0_71] : memref<3x8x32xf32, #tpu.memory_space<vmem>>, vector<1x1x32xf32>
    %90 = vector.shape_cast %89 : vector<1x1x32xf32> to vector<1x32xf32>
    %91 = vector.broadcast %90 : vector<1x32xf32> to vector<32x32xf32>
    %92 = arith.addf %88, %91 : vector<32x32xf32>
    %cst_72 = arith.constant 0.000000e+00 : f32
    %93 = vector.broadcast %cst_72 : f32 to vector<32x32xf32>
    %94 = arith.maximumf %92, %93 : vector<32x32xf32>
    %95 = arith.truncf %94 : vector<32x32xf32> to vector<32x32xbf16>
    %c1_73 = arith.constant 1 : index
    %c32_74 = arith.constant 32 : index
    %c0_75 = arith.constant 0 : index
    %96 = vector.load %arg3[%c1_73, %c32_74, %c0_75] : memref<3x192x32xbf16, #tpu.memory_space<vmem>>, vector<1x32x32xbf16>
    %97 = vector.shape_cast %96 : vector<1x32x32xbf16> to vector<32x32xbf16>
    %cst_76 = arith.constant dense<0.000000e+00> : vector<32x32xf32>
    %98 = tpu.matmul %95, %97, %cst_76 {dimension_numbers = #tpu.dot_dimension_numbers<[1], [0], [0], [1], [0, 0, 1, 1], [], []>} : vector<32x32xbf16>, vector<32x32xbf16>, vector<32x32xf32> -> vector<32x32xf32>
    %c1_77 = arith.constant 1 : index
    %c1_78 = arith.constant 1 : index
    %c0_79 = arith.constant 0 : index
    %99 = vector.load %arg4[%c1_77, %c1_78, %c0_79] : memref<3x8x32xf32, #tpu.memory_space<vmem>>, vector<1x1x32xf32>
    %100 = vector.shape_cast %99 : vector<1x1x32xf32> to vector<1x32xf32>
    %101 = vector.broadcast %100 : vector<1x32xf32> to vector<32x32xf32>
    %102 = arith.addf %98, %101 : vector<32x32xf32>
    %cst_80 = arith.constant 0.000000e+00 : f32
    %103 = vector.broadcast %cst_80 : f32 to vector<32x32xf32>
    %104 = arith.maximumf %102, %103 : vector<32x32xf32>
    %105 = arith.truncf %84 : vector<32x32xf32> to vector<32x32xbf16>
    %c1_81 = arith.constant 1 : index
    %c64_82 = arith.constant 64 : index
    %c0_83 = arith.constant 0 : index
    %106 = vector.load %arg3[%c1_81, %c64_82, %c0_83] : memref<3x192x32xbf16, #tpu.memory_space<vmem>>, vector<1x32x32xbf16>
    %107 = vector.shape_cast %106 : vector<1x32x32xbf16> to vector<32x32xbf16>
    %cst_84 = arith.constant dense<0.000000e+00> : vector<32x32xf32>
    %108 = tpu.matmul %105, %107, %cst_84 {dimension_numbers = #tpu.dot_dimension_numbers<[1], [0], [0], [1], [0, 0, 1, 1], [], []>} : vector<32x32xbf16>, vector<32x32xbf16>, vector<32x32xf32> -> vector<32x32xf32>
    %c1_85 = arith.constant 1 : index
    %c2_86 = arith.constant 2 : index
    %c0_87 = arith.constant 0 : index
    %109 = vector.load %arg4[%c1_85, %c2_86, %c0_87] : memref<3x8x32xf32, #tpu.memory_space<vmem>>, vector<1x1x32xf32>
    %110 = vector.shape_cast %109 : vector<1x1x32xf32> to vector<1x32xf32>
    %111 = vector.broadcast %110 : vector<1x32xf32> to vector<32x32xf32>
    %112 = arith.addf %108, %111 : vector<32x32xf32>
    %cst_88 = arith.constant 0.000000e+00 : f32
    %113 = vector.broadcast %cst_88 : f32 to vector<32x32xf32>
    %114 = arith.maximumf %112, %113 : vector<32x32xf32>
    %115 = arith.truncf %114 : vector<32x32xf32> to vector<32x32xbf16>
    %c1_89 = arith.constant 1 : index
    %c96_90 = arith.constant 96 : index
    %c0_91 = arith.constant 0 : index
    %116 = vector.load %arg3[%c1_89, %c96_90, %c0_91] : memref<3x192x32xbf16, #tpu.memory_space<vmem>>, vector<1x32x32xbf16>
    %117 = vector.shape_cast %116 : vector<1x32x32xbf16> to vector<32x32xbf16>
    %cst_92 = arith.constant dense<0.000000e+00> : vector<32x32xf32>
    %118 = tpu.matmul %115, %117, %cst_92 {dimension_numbers = #tpu.dot_dimension_numbers<[1], [0], [0], [1], [0, 0, 1, 1], [], []>} : vector<32x32xbf16>, vector<32x32xbf16>, vector<32x32xf32> -> vector<32x32xf32>
    %c1_93 = arith.constant 1 : index
    %c3_94 = arith.constant 3 : index
    %c0_95 = arith.constant 0 : index
    %119 = vector.load %arg4[%c1_93, %c3_94, %c0_95] : memref<3x8x32xf32, #tpu.memory_space<vmem>>, vector<1x1x32xf32>
    %120 = vector.shape_cast %119 : vector<1x1x32xf32> to vector<1x32xf32>
    %121 = vector.broadcast %120 : vector<1x32xf32> to vector<32x32xf32>
    %122 = arith.addf %118, %121 : vector<32x32xf32>
    %cst_96 = arith.constant 0.000000e+00 : f32
    %123 = vector.broadcast %cst_96 : f32 to vector<32x32xf32>
    %124 = arith.maximumf %122, %123 : vector<32x32xf32>
    %125 = arith.truncf %104 : vector<32x32xf32> to vector<32x32xbf16>
    %c1_97 = arith.constant 1 : index
    %c128_98 = arith.constant 128 : index
    %c0_99 = arith.constant 0 : index
    %126 = vector.load %arg3[%c1_97, %c128_98, %c0_99] : memref<3x192x32xbf16, #tpu.memory_space<vmem>>, vector<1x32x32xbf16>
    %127 = vector.shape_cast %126 : vector<1x32x32xbf16> to vector<32x32xbf16>
    %cst_100 = arith.constant dense<0.000000e+00> : vector<32x32xf32>
    %128 = tpu.matmul %125, %127, %cst_100 {dimension_numbers = #tpu.dot_dimension_numbers<[1], [0], [0], [1], [0, 0, 1, 1], [], []>} : vector<32x32xbf16>, vector<32x32xbf16>, vector<32x32xf32> -> vector<32x32xf32>
    %129 = arith.truncf %124 : vector<32x32xf32> to vector<32x32xbf16>
    %c1_101 = arith.constant 1 : index
    %c160_102 = arith.constant 160 : index
    %c0_103 = arith.constant 0 : index
    %130 = vector.load %arg3[%c1_101, %c160_102, %c0_103] : memref<3x192x32xbf16, #tpu.memory_space<vmem>>, vector<1x32x32xbf16>
    %131 = vector.shape_cast %130 : vector<1x32x32xbf16> to vector<32x32xbf16>
    %cst_104 = arith.constant dense<0.000000e+00> : vector<32x32xf32>
    %132 = tpu.matmul %129, %131, %cst_104 {dimension_numbers = #tpu.dot_dimension_numbers<[1], [0], [0], [1], [0, 0, 1, 1], [], []>} : vector<32x32xbf16>, vector<32x32xbf16>, vector<32x32xf32> -> vector<32x32xf32>
    %133 = arith.addf %128, %132 : vector<32x32xf32>
    %c1_105 = arith.constant 1 : index
    %c4_106 = arith.constant 4 : index
    %c0_107 = arith.constant 0 : index
    %134 = vector.load %arg4[%c1_105, %c4_106, %c0_107] : memref<3x8x32xf32, #tpu.memory_space<vmem>>, vector<1x1x32xf32>
    %135 = vector.shape_cast %134 : vector<1x1x32xf32> to vector<1x32xf32>
    %136 = vector.broadcast %135 : vector<1x32xf32> to vector<32x32xf32>
    %137 = arith.addf %133, %136 : vector<32x32xf32>
    %cst_108 = arith.constant 0.000000e+00 : f32
    %138 = vector.broadcast %cst_108 : f32 to vector<32x32xf32>
    %139 = arith.maximumf %137, %138 : vector<32x32xf32>
    %c24_i32 = arith.constant 24 : i32
    %140 = vector.broadcast %c24_i32 : i32 to vector<32x1xi32>
    %141 = arith.cmpi slt, %0, %140 : vector<32x1xi32>
    %cst_109 = arith.constant 0.000000e+00 : f32
    %142 = vector.shape_cast %141 : vector<32x1xi1> to vector<32x1xi1>
    %143 = vector.broadcast %142 : vector<32x1xi1> to vector<32x32xi1>
    %144 = vector.broadcast %cst_109 : f32 to vector<32x32xf32>
    %145 = arith.select %143, %139, %144 : vector<32x32xi1>, vector<32x32xf32>
    %c1_110 = arith.constant 1 : index
    %c0_111 = arith.constant 0 : index
    %c0_112 = arith.constant 0 : index
    %146 = vector.load %arg5[%c1_110, %c0_111, %c0_112] : memref<3x32x32xf32, #tpu.memory_space<vmem>>, vector<1x32x32xf32>
    %147 = vector.shape_cast %146 : vector<1x32x32xf32> to vector<32x32xf32>
    %148 = vector.shape_cast %145 : vector<32x32xf32> to vector<1x32x32xf32>
    tpu.vector_store %arg5[%c1_110, %c0_111, %c0_112], %148 {strides = array<i32>} : memref<3x32x32xf32, #tpu.memory_space<vmem>>, vector<1x32x32xf32>,
    %c2_113 = arith.constant 2 : index
    %c32_114 = arith.constant 32 : index
    %c0_115 = arith.constant 0 : index
    %149 = vector.load %arg0[%c2_113, %c32_114, %c0_115] : memref<3x64x32xbf16, #tpu.memory_space<vmem>>, vector<1x32x32xbf16>
    %150 = vector.shape_cast %149 : vector<1x32x32xbf16> to vector<32x32xbf16>
    %c2_116 = arith.constant 2 : index
    %c0_117 = arith.constant 0 : index
    %c0_118 = arith.constant 0 : index
    %151 = vector.load %arg1[%c2_116, %c0_117, %c0_118] : memref<3x32x32xbf16, #tpu.memory_space<vmem>>, vector<1x32x32xbf16>
    %152 = vector.shape_cast %151 : vector<1x32x32xbf16> to vector<32x32xbf16>
    %cst_119 = arith.constant dense<0.000000e+00> : vector<32x32xf32>
    %153 = tpu.matmul %152, %150, %cst_119 {dimension_numbers = #tpu.dot_dimension_numbers<[1], [0], [0], [1], [0, 0, 1, 1], [], []>} : vector<32x32xbf16>, vector<32x32xbf16>, vector<32x32xf32> -> vector<32x32xf32>
    %c2_120 = arith.constant 2 : index
    %c0_121 = arith.constant 0 : index
    %c0_122 = arith.constant 0 : index
    %154 = vector.load %arg2[%c2_120, %c0_121, %c0_122] : memref<3x32x64xbf16, #tpu.memory_space<vmem>>, vector<1x32x64xbf16>
    %155 = vector.shape_cast %154 : vector<1x32x64xbf16> to vector<32x64xbf16>
    %c2_123 = arith.constant 2 : index
    %c0_124 = arith.constant 0 : index
    %c0_125 = arith.constant 0 : index
    %156 = vector.load %arg0[%c2_123, %c0_124, %c0_125] : memref<3x64x32xbf16, #tpu.memory_space<vmem>>, vector<1x64x32xbf16>
    %157 = vector.shape_cast %156 : vector<1x64x32xbf16> to vector<64x32xbf16>
    %cst_126 = arith.constant dense<0.000000e+00> : vector<32x32xf32>
    %158 = tpu.matmul %155, %157, %cst_126 {dimension_numbers = #tpu.dot_dimension_numbers<[1], [0], [0], [1], [0, 0, 1, 1], [], []>} : vector<32x64xbf16>, vector<64x32xbf16>, vector<32x32xf32> -> vector<32x32xf32>
    %159 = arith.truncf %153 : vector<32x32xf32> to vector<32x32xbf16>
    %c2_127 = arith.constant 2 : index
    %c0_128 = arith.constant 0 : index
    %c0_129 = arith.constant 0 : index
    %160 = vector.load %arg3[%c2_127, %c0_128, %c0_129] : memref<3x192x32xbf16, #tpu.memory_space<vmem>>, vector<1x32x32xbf16>
    %161 = vector.shape_cast %160 : vector<1x32x32xbf16> to vector<32x32xbf16>
    %cst_130 = arith.constant dense<0.000000e+00> : vector<32x32xf32>
    %162 = tpu.matmul %159, %161, %cst_130 {dimension_numbers = #tpu.dot_dimension_numbers<[1], [0], [0], [1], [0, 0, 1, 1], [], []>} : vector<32x32xbf16>, vector<32x32xbf16>, vector<32x32xf32> -> vector<32x32xf32>
    %c2_131 = arith.constant 2 : index
    %c0_132 = arith.constant 0 : index
    %c0_133 = arith.constant 0 : index
    %163 = vector.load %arg4[%c2_131, %c0_132, %c0_133] : memref<3x8x32xf32, #tpu.memory_space<vmem>>, vector<1x1x32xf32>
    %164 = vector.shape_cast %163 : vector<1x1x32xf32> to vector<1x32xf32>
    %165 = vector.broadcast %164 : vector<1x32xf32> to vector<32x32xf32>
    %166 = arith.addf %162, %165 : vector<32x32xf32>
    %cst_134 = arith.constant 0.000000e+00 : f32
    %167 = vector.broadcast %cst_134 : f32 to vector<32x32xf32>
    %168 = arith.maximumf %166, %167 : vector<32x32xf32>
    %169 = arith.truncf %168 : vector<32x32xf32> to vector<32x32xbf16>
    %c2_135 = arith.constant 2 : index
    %c32_136 = arith.constant 32 : index
    %c0_137 = arith.constant 0 : index
    %170 = vector.load %arg3[%c2_135, %c32_136, %c0_137] : memref<3x192x32xbf16, #tpu.memory_space<vmem>>, vector<1x32x32xbf16>
    %171 = vector.shape_cast %170 : vector<1x32x32xbf16> to vector<32x32xbf16>
    %cst_138 = arith.constant dense<0.000000e+00> : vector<32x32xf32>
    %172 = tpu.matmul %169, %171, %cst_138 {dimension_numbers = #tpu.dot_dimension_numbers<[1], [0], [0], [1], [0, 0, 1, 1], [], []>} : vector<32x32xbf16>, vector<32x32xbf16>, vector<32x32xf32> -> vector<32x32xf32>
    %c2_139 = arith.constant 2 : index
    %c1_140 = arith.constant 1 : index
    %c0_141 = arith.constant 0 : index
    %173 = vector.load %arg4[%c2_139, %c1_140, %c0_141] : memref<3x8x32xf32, #tpu.memory_space<vmem>>, vector<1x1x32xf32>
    %174 = vector.shape_cast %173 : vector<1x1x32xf32> to vector<1x32xf32>
    %175 = vector.broadcast %174 : vector<1x32xf32> to vector<32x32xf32>
    %176 = arith.addf %172, %175 : vector<32x32xf32>
    %cst_142 = arith.constant 0.000000e+00 : f32
    %177 = vector.broadcast %cst_142 : f32 to vector<32x32xf32>
    %178 = arith.maximumf %176, %177 : vector<32x32xf32>
    %179 = arith.truncf %158 : vector<32x32xf32> to vector<32x32xbf16>
    %c2_143 = arith.constant 2 : index
    %c64_144 = arith.constant 64 : index
    %c0_145 = arith.constant 0 : index
    %180 = vector.load %arg3[%c2_143, %c64_144, %c0_145] : memref<3x192x32xbf16, #tpu.memory_space<vmem>>, vector<1x32x32xbf16>
    %181 = vector.shape_cast %180 : vector<1x32x32xbf16> to vector<32x32xbf16>
    %cst_146 = arith.constant dense<0.000000e+00> : vector<32x32xf32>
    %182 = tpu.matmul %179, %181, %cst_146 {dimension_numbers = #tpu.dot_dimension_numbers<[1], [0], [0], [1], [0, 0, 1, 1], [], []>} : vector<32x32xbf16>, vector<32x32xbf16>, vector<32x32xf32> -> vector<32x32xf32>
    %c2_147 = arith.constant 2 : index
    %c2_148 = arith.constant 2 : index
    %c0_149 = arith.constant 0 : index
    %183 = vector.load %arg4[%c2_147, %c2_148, %c0_149] : memref<3x8x32xf32, #tpu.memory_space<vmem>>, vector<1x1x32xf32>
    %184 = vector.shape_cast %183 : vector<1x1x32xf32> to vector<1x32xf32>
    %185 = vector.broadcast %184 : vector<1x32xf32> to vector<32x32xf32>
    %186 = arith.addf %182, %185 : vector<32x32xf32>
    %cst_150 = arith.constant 0.000000e+00 : f32
    %187 = vector.broadcast %cst_150 : f32 to vector<32x32xf32>
    %188 = arith.maximumf %186, %187 : vector<32x32xf32>
    %189 = arith.truncf %188 : vector<32x32xf32> to vector<32x32xbf16>
    %c2_151 = arith.constant 2 : index
    %c96_152 = arith.constant 96 : index
    %c0_153 = arith.constant 0 : index
    %190 = vector.load %arg3[%c2_151, %c96_152, %c0_153] : memref<3x192x32xbf16, #tpu.memory_space<vmem>>, vector<1x32x32xbf16>
    %191 = vector.shape_cast %190 : vector<1x32x32xbf16> to vector<32x32xbf16>
    %cst_154 = arith.constant dense<0.000000e+00> : vector<32x32xf32>
    %192 = tpu.matmul %189, %191, %cst_154 {dimension_numbers = #tpu.dot_dimension_numbers<[1], [0], [0], [1], [0, 0, 1, 1], [], []>} : vector<32x32xbf16>, vector<32x32xbf16>, vector<32x32xf32> -> vector<32x32xf32>
    %c2_155 = arith.constant 2 : index
    %c3_156 = arith.constant 3 : index
    %c0_157 = arith.constant 0 : index
    %193 = vector.load %arg4[%c2_155, %c3_156, %c0_157] : memref<3x8x32xf32, #tpu.memory_space<vmem>>, vector<1x1x32xf32>
    %194 = vector.shape_cast %193 : vector<1x1x32xf32> to vector<1x32xf32>
    %195 = vector.broadcast %194 : vector<1x32xf32> to vector<32x32xf32>
    %196 = arith.addf %192, %195 : vector<32x32xf32>
    %cst_158 = arith.constant 0.000000e+00 : f32
    %197 = vector.broadcast %cst_158 : f32 to vector<32x32xf32>
    %198 = arith.maximumf %196, %197 : vector<32x32xf32>
    %199 = arith.truncf %178 : vector<32x32xf32> to vector<32x32xbf16>
    %c2_159 = arith.constant 2 : index
    %c128_160 = arith.constant 128 : index
    %c0_161 = arith.constant 0 : index
    %200 = vector.load %arg3[%c2_159, %c128_160, %c0_161] : memref<3x192x32xbf16, #tpu.memory_space<vmem>>, vector<1x32x32xbf16>
    %201 = vector.shape_cast %200 : vector<1x32x32xbf16> to vector<32x32xbf16>
    %cst_162 = arith.constant dense<0.000000e+00> : vector<32x32xf32>
    %202 = tpu.matmul %199, %201, %cst_162 {dimension_numbers = #tpu.dot_dimension_numbers<[1], [0], [0], [1], [0, 0, 1, 1], [], []>} : vector<32x32xbf16>, vector<32x32xbf16>, vector<32x32xf32> -> vector<32x32xf32>
    %203 = arith.truncf %198 : vector<32x32xf32> to vector<32x32xbf16>
    %c2_163 = arith.constant 2 : index
    %c160_164 = arith.constant 160 : index
    %c0_165 = arith.constant 0 : index
    %204 = vector.load %arg3[%c2_163, %c160_164, %c0_165] : memref<3x192x32xbf16, #tpu.memory_space<vmem>>, vector<1x32x32xbf16>
    %205 = vector.shape_cast %204 : vector<1x32x32xbf16> to vector<32x32xbf16>
    %cst_166 = arith.constant dense<0.000000e+00> : vector<32x32xf32>
    %206 = tpu.matmul %203, %205, %cst_166 {dimension_numbers = #tpu.dot_dimension_numbers<[1], [0], [0], [1], [0, 0, 1, 1], [], []>} : vector<32x32xbf16>, vector<32x32xbf16>, vector<32x32xf32> -> vector<32x32xf32>
    %207 = arith.addf %202, %206 : vector<32x32xf32>
    %c2_167 = arith.constant 2 : index
    %c4_168 = arith.constant 4 : index
    %c0_169 = arith.constant 0 : index
    %208 = vector.load %arg4[%c2_167, %c4_168, %c0_169] : memref<3x8x32xf32, #tpu.memory_space<vmem>>, vector<1x1x32xf32>
    %209 = vector.shape_cast %208 : vector<1x1x32xf32> to vector<1x32xf32>
    %210 = vector.broadcast %209 : vector<1x32xf32> to vector<32x32xf32>
    %211 = arith.addf %207, %210 : vector<32x32xf32>
    %cst_170 = arith.constant 0.000000e+00 : f32
    %212 = vector.broadcast %cst_170 : f32 to vector<32x32xf32>
    %213 = arith.maximumf %211, %212 : vector<32x32xf32>
    %c12_i32 = arith.constant 12 : i32
    %214 = vector.broadcast %c12_i32 : i32 to vector<32x1xi32>
    %215 = arith.cmpi slt, %0, %214 : vector<32x1xi32>
    %cst_171 = arith.constant 0.000000e+00 : f32
    %216 = vector.shape_cast %215 : vector<32x1xi1> to vector<32x1xi1>
    %217 = vector.broadcast %216 : vector<32x1xi1> to vector<32x32xi1>
    %218 = vector.broadcast %cst_171 : f32 to vector<32x32xf32>
    %219 = arith.select %217, %213, %218 : vector<32x32xi1>, vector<32x32xf32>
    %c2_172 = arith.constant 2 : index
    %c0_173 = arith.constant 0 : index
    %c0_174 = arith.constant 0 : index
    %220 = vector.load %arg5[%c2_172, %c0_173, %c0_174] : memref<3x32x32xf32, #tpu.memory_space<vmem>>, vector<1x32x32xf32>
    %221 = vector.shape_cast %220 : vector<1x32x32xf32> to vector<32x32xf32>
    %222 = vector.shape_cast %219 : vector<32x32xf32> to vector<1x32x32xf32>
    tpu.vector_store %arg5[%c2_172, %c0_173, %c0_174], %222 {strides = array<i32>} : memref<3x32x32xf32, #tpu.memory_space<vmem>>, vector<1x32x32xf32>,
    return
  }
}

</mosaic_0001>

<llo_original>
// kernel: tpu_custom_call.1
$region0: #{tpu_custom_call.1}
  #allocation0 [shape = 'u32[]', space=smem, size = 0x4, offset = 0x4, fixed_abs, tag = 'smem constant byte address 0x4 - core index']
  #allocation1 [shape = 'u32[144,128]{1,0:T(1,128)}', space=vmem, size = 0x12000, scoped, tag = 'internal scratch']
  %s0 = inlined_call_operand.vmem [shape: bf16[3,64,32], index: 0, kind: input, shape index: {}]
  %s1 = inlined_call_operand.vmem [shape: bf16[3,32,32], index: 1, kind: input, shape index: {}]
  %s2 = inlined_call_operand.vmem [shape: bf16[3,32,64], index: 2, kind: input, shape index: {}]
  %s3 = inlined_call_operand.vmem [shape: bf16[3,192,32], index: 3, kind: input, shape index: {}]
  %s4 = inlined_call_operand.vmem [shape: f32[3,8,32], index: 4, kind: input, shape index: {}]
  %s5 = inlined_call_operand.hbm [shape: f32[3,32,32], index: 5, kind: output, shape index: {}]
  %s6 = sld [smem:[#allocation0]]
  $region30: #{tpu_custom_call.1} parent=0
    _
  %s8 = ssub.s32 1, %s6
  %s9 = scalar_select 0, %s8, %s6
  $region1: #{tpu_custom_call.1} parent=0
    #allocation2 [shape = 'u8[49152]{0}', space=vmem, size = 0xc000, scoped, tag = 'output window, operand 0, single buffered']
    #allocation3 [shape = 's32[1]{0}', space=sflag, size = 0x4, scoped, tag = 'scoped memory for tpu_custom_call.1']
    %10 = vsyncpa [#allocation3], 0
    // Predicated region
    $region2: #{tpu_custom_call.1} parent=1 // pred_check
      _
    $region3: #{tpu_custom_call.1} parent=1 // pred_check_branch
      %12 = sbr.rel (0) target = $region5
    $region4: #{tpu_custom_call.1} parent=1 // pred_region
      _
    $region5: #{tpu_custom_call.1} parent=1 // pred_fallthru
      _
    // Predicated region
    $region6: #{tpu_custom_call.1} parent=1 // pred_check
      _
    $region7: #{tpu_custom_call.1} parent=1 // pred_check_branch
      %14 = sbr.rel (0) target = $region9
    $region8: #{tpu_custom_call.1} parent=1 // pred_region
      _
    $region9: #{tpu_custom_call.1} parent=1 // pred_fallthru
      _
    // Predicated region
    $region10: #{tpu_custom_call.1} parent=1 // pred_check
      _
    $region11: #{tpu_custom_call.1} parent=1 // pred_check_branch
      %16 = sbr.rel (0) target = $region13
    $region12: #{tpu_custom_call.1} parent=1 // pred_region
      _
    $region13: #{tpu_custom_call.1} parent=1 // pred_fallthru
      _
    // Predicated region
    $region14: #{tpu_custom_call.1} parent=1 // pred_check
      _
    $region15: #{tpu_custom_call.1} parent=1 // pred_check_branch
      %18 = sbr.rel (0) target = $region17
    $region16: #{tpu_custom_call.1} parent=1 // pred_region
      _
    $region17: #{tpu_custom_call.1} parent=1 // pred_fallthru
      _
    // Predicated region
    $region18: #{tpu_custom_call.1} parent=1 // pred_check
      _
    $region19: #{tpu_custom_call.1} parent=1 // pred_check_branch
      %20 = sbr.rel (0) target = $region21
    $region20: #{tpu_custom_call.1} parent=1 // pred_region
      _
    $region21: #{tpu_custom_call.1} parent=1 // pred_fallthru
      _
    %v22 = vlaneseq
    %v23 = vshrl.u32 %v22, 7
    %v24 = vadd.s32 %v23, 8
    %v25 = vadd.s32 %v23, 16
    %v26 = vadd.s32 %v23, 24
    %v27 = vld [vmem:[%s0 + $0x10] sm:$0xf]
    %v28 = vld [vmem:[%s0 + $0x14] sm:$0xf]
    %v29 = vld [vmem:[%s0 + $0x18] sm:$0xf]
    %v30 = vld [vmem:[%s0 + $0x1c] sm:$0xf]
    %v31 = vld [vmem:[%s1] sm:$0xf]
    %v32 = vld [vmem:[%s1 + $0x4] sm:$0xf]
    %v33 = vld [vmem:[%s1 + $0x8] sm:$0xf]
    %v34 = vld [vmem:[%s1 + $0xc] sm:$0xf]
    %v39 = vunpack.c.l.b16 %v31
    %v40 = vunpack.c.l.b16 %v32
    %v41 = vunpack.c.l.b16 %v33
    %v42 = vunpack.c.l.b16 %v34
    %v43 = vpack.c.b16 %v40, %v39
    %v44 = vpack.c.b16 %v42, %v41
    %v49 = vunpack.c.l.b16 %v27
    %v50 = vunpack.c.l.b16 %v28
    %v51 = vunpack.c.l.b16 %v29
    %v52 = vunpack.c.l.b16 %v30
    %v53 = vpack.c.b16 %v50, %v49
    %v54 = vpack.c.b16 %v52, %v51
    %vm57 = vcmask 261120
    %v59 = vsel %vm57, %v43, 0
    %v62 = vsel %vm57, %v44, 0
    %64 = vmatprep.subr.bf16.mxu0 0
    %65 = vmatpush1.bf16.msra.mxu0 %v53
    %66 = vmatprep.subr.bf16.mxu0 0
    %67 = vmatpush1.bf16.msra.mxu0 %v54
    %68 = vmatprep.subr.bf16.mxu0 0
    %69 = vmatpush1.bf16.msra.mxu0 0
    %70 = vmatprep.subr.bf16.mxu0 0
    %71 = vmatpush1.bf16.msra.mxu0 0
    %72 = vmatprep.subr.bf16.mxu0 0
    %73 = vmatpush1.bf16.msra.mxu0 0
    %74 = vmatprep.subr.bf16.mxu0 0
    %75 = vmatpush1.bf16.msra.mxu0 0
    %76 = vmatprep.subr.bf16.mxu0 0
    %77 = vmatpush1.bf16.msra.mxu0 0
    %78 = vmatprep.subr.bf16.mxu0 0
    %79 = vmatpush1.bf16.msra.mxu0 0
    %80 = vmatprep.subr.bf16.mxu0 0
    %81 = vmatpush1.bf16.msra.mxu0 0
    %82 = vmatprep.subr.bf16.mxu0 0
    %83 = vmatpush1.bf16.msra.mxu0 0
    %84 = vmatprep.subr.bf16.mxu0 0
    %85 = vmatpush1.bf16.msra.mxu0 0
    %86 = vmatprep.subr.bf16.mxu0 0
    %87 = vmatpush1.bf16.msra.mxu0 0
    %88 = vmatprep.subr.bf16.mxu0 0
    %89 = vmatpush1.bf16.msra.mxu0 0
    %90 = vmatprep.subr.bf16.mxu0 0
    %91 = vmatpush1.bf16.msra.mxu0 0
    %92 = vmatprep.subr.bf16.mxu0 0
    %93 = vmatpush1.bf16.msra.mxu0 0
    %94 = vmatprep.subr.bf16.mxu0 0
    %95 = vmatpush1.bf16.msra.mxu0 0
    %96 = vmatprep.mubr.bf16.mxu0 0
    %97 = vmatmul.mubr.bf16.gmra.mrb[0].mxu0 %v59
    %v98 = vpop.f32.mrb[0].mxu0
    %v99 = vadd.f32 0.0, %v98
    %v100 = vpop.f32.mrb[0].mxu0
    %v101 = vpop.f32.mrb[0].mxu0
    %v102 = vadd.f32 0.0, %v101
    %v103 = vpop.f32.mrb[0].mxu0
    %104 = vmatprep.mubr.bf16.mxu0 0
    %105 = vmatmul.mubr.bf16.gmra.mrb[0].mxu0 %v62
    %v106 = vpop.f32.mrb[0].mxu0
    %v107 = vadd.f32 0.0, %v106
    %v108 = vpop.f32.mrb[0].mxu0
    %v109 = vpop.f32.mrb[0].mxu0
    %v110 = vadd.f32 0.0, %v109
    %v111 = vpop.f32.mrb[0].mxu0
    %112 = vdwg.mxu0
    %v113 = vld [vmem:[%s2] sm:$0xf]
    %v114 = vld [vmem:[%s2 + $0x4] sm:$0xf]
    %v115 = vld [vmem:[%s2 + $0x8] sm:$0xf]
    %v116 = vld [vmem:[%s2 + $0xc] sm:$0xf]
    %v117 = vld [vmem:[%s0] sm:$0xf]
    %v118 = vld [vmem:[%s0 + $0x4] sm:$0xf]
    %v119 = vld [vmem:[%s0 + $0x8] sm:$0xf]
    %v120 = vld [vmem:[%s0 + $0xc] sm:$0xf]
    %v125 = vunpack.c.l.b16 %v113
    %v126 = vunpack.c.l.b16 %v114
    %v127 = vunpack.c.l.b16 %v115
    %v128 = vunpack.c.l.b16 %v116
    %v129 = vpack.c.b16 %v126, %v125
    %v130 = vpack.c.b16 %v128, %v127
    %v135 = vunpack.c.l.b16 %v117
    %v136 = vunpack.c.l.b16 %v118
    %v137 = vunpack.c.l.b16 %v119
    %v138 = vunpack.c.l.b16 %v120
    %v139 = vpack.c.b16 %v136, %v135
    %v140 = vpack.c.b16 %v138, %v137
    %vm143 = vcmask 523264
    %v145 = vsel %vm143, %v129, 0
    %v148 = vsel %vm143, %v130, 0
    %150 = vmatprep.subr.bf16.mxu0 0
    %151 = vmatpush1.bf16.msra.mxu0 %v139
    %152 = vmatprep.subr.bf16.mxu0 0
    %153 = vmatpush1.bf16.msra.mxu0 %v140
    %154 = vmatprep.subr.bf16.mxu0 0
    %155 = vmatpush1.bf16.msra.mxu0 %v53
    %156 = vmatprep.subr.bf16.mxu0 0
    %157 = vmatpush1.bf16.msra.mxu0 %v54
    %158 = vmatprep.subr.bf16.mxu0 0
    %159 = vmatpush1.bf16.msra.mxu0 0
    %160 = vmatprep.subr.bf16.mxu0 0
    %161 = vmatpush1.bf16.msra.mxu0 0
    %162 = vmatprep.subr.bf16.mxu0 0
    %163 = vmatpush1.bf16.msra.mxu0 0
    %164 = vmatprep.subr.bf16.mxu0 0
    %165 = vmatpush1.bf16.msra.mxu0 0
    %166 = vmatprep.subr.bf16.mxu0 0
    %167 = vmatpush1.bf16.msra.mxu0 0
    %168 = vmatprep.subr.bf16.mxu0 0
    %169 = vmatpush1.bf16.msra.mxu0 0
    %170 = vmatprep.subr.bf16.mxu0 0
    %171 = vmatpush1.bf16.msra.mxu0 0
    %172 = vmatprep.subr.bf16.mxu0 0
    %173 = vmatpush1.bf16.msra.mxu0 0
    %174 = vmatprep.subr.bf16.mxu0 0
    %175 = vmatpush1.bf16.msra.mxu0 0
    %176 = vmatprep.subr.bf16.mxu0 0
    %177 = vmatpush1.bf16.msra.mxu0 0
    %178 = vmatprep.subr.bf16.mxu0 0
    %179 = vmatpush1.bf16.msra.mxu0 0
    %180 = vmatprep.subr.bf16.mxu0 0
    %181 = vmatpush1.bf16.msra.mxu0 0
    %182 = vmatprep.mubr.bf16.mxu0 0
    %183 = vmatmul.mubr.bf16.gmra.mrb[0].mxu0 %v145
    %v184 = vpop.f32.mrb[0].mxu0
    %v185 = vadd.f32 0.0, %v184
    %v186 = vpop.f32.mrb[0].mxu0
    %v187 = vpop.f32.mrb[0].mxu0
    %v188 = vadd.f32 0.0, %v187
    %v189 = vpop.f32.mrb[0].mxu0
    %190 = vmatprep.mubr.bf16.mxu0 0
    %191 = vmatmul.mubr.bf16.gmra.mrb[0].mxu0 %v148
    %v192 = vpop.f32.mrb[0].mxu0
    %v193 = vadd.f32 0.0, %v192
    %v194 = vpop.f32.mrb[0].mxu0
    %v195 = vpop.f32.mrb[0].mxu0
    %v196 = vadd.f32 0.0, %v195
    %v197 = vpop.f32.mrb[0].mxu0
    %198 = vdwg.mxu0
    %v199 = vpack.c.bf16 %v102, %v99
    %v200 = vpack.c.bf16 %v110, %v107
    %v201 = vld [vmem:[%s3] sm:$0xf]
    %v202 = vld [vmem:[%s3 + $0x4] sm:$0xf]
    %v203 = vld [vmem:[%s3 + $0x8] sm:$0xf]
    %v204 = vld [vmem:[%s3 + $0xc] sm:$0xf]
    %v205 = vld [vmem:[%s4] sm:$0x1]
    %v206 = vlaneseq
    %v207 = vshrl.u32 %v206, 7
    %v208 = vsub.s32 0, %v207
    %v209 = vrot.slane %v205, %v208
    %v214 = vunpack.c.l.b16 %v201
    %v215 = vunpack.c.l.b16 %v202
    %v216 = vunpack.c.l.b16 %v203
    %v217 = vunpack.c.l.b16 %v204
    %v218 = vpack.c.b16 %v215, %v214
    %v219 = vpack.c.b16 %v217, %v216
    %v223 = vsel %vm57, %v199, 0
    %v226 = vsel %vm57, %v200, 0
    %228 = vmatprep.subr.bf16.mxu0 0
    %229 = vmatpush1.bf16.msra.mxu0 %v218
    %230 = vmatprep.subr.bf16.mxu0 0
    %231 = vmatpush1.bf16.msra.mxu0 %v219
    %232 = vmatprep.subr.bf16.mxu0 0
    %233 = vmatpush1.bf16.msra.mxu0 0
    %234 = vmatprep.subr.bf16.mxu0 0
    %235 = vmatpush1.bf16.msra.mxu0 0
    %236 = vmatprep.subr.bf16.mxu0 0
    %237 = vmatpush1.bf16.msra.mxu0 0
    %238 = vmatprep.subr.bf16.mxu0 0
    %239 = vmatpush1.bf16.msra.mxu0 0
    %240 = vmatprep.subr.bf16.mxu0 0
    %241 = vmatpush1.bf16.msra.mxu0 0
    %242 = vmatprep.subr.bf16.mxu0 0
    %243 = vmatpush1.bf16.msra.mxu0 0
    %244 = vmatprep.subr.bf16.mxu0 0
    %245 = vmatpush1.bf16.msra.mxu0 0
    %246 = vmatprep.subr.bf16.mxu0 0
    %247 = vmatpush1.bf16.msra.mxu0 0
    %248 = vmatprep.subr.bf16.mxu0 0
    %249 = vmatpush1.bf16.msra.mxu0 0
    %250 = vmatprep.subr.bf16.mxu0 0
    %251 = vmatpush1.bf16.msra.mxu0 0
    %252 = vmatprep.subr.bf16.mxu0 0
    %253 = vmatpush1.bf16.msra.mxu0 0
    %254 = vmatprep.subr.bf16.mxu0 0
    %255 = vmatpush1.bf16.msra.mxu0 0
    %256 = vmatprep.subr.bf16.mxu0 0
    %257 = vmatpush1.bf16.msra.mxu0 0
    %258 = vmatprep.subr.bf16.mxu0 0
    %259 = vmatpush1.bf16.msra.mxu0 0
    %260 = vmatprep.mubr.bf16.mxu0 0
    %261 = vmatmul.mubr.bf16.gmra.mrb[0].mxu0 %v223
    %v262 = vpop.f32.mrb[0].mxu0
    %v263 = vadd.f32 %v209, %v262
    %v264 = vpop.f32.mrb[0].mxu0
    %v265 = vpop.f32.mrb[0].mxu0
    %v266 = vadd.f32 %v209, %v265
    %v267 = vpop.f32.mrb[0].mxu0
    %268 = vmatprep.mubr.bf16.mxu0 0
    %269 = vmatmul.mubr.bf16.gmra.mrb[0].mxu0 %v226
    %v270 = vpop.f32.mrb[0].mxu0
    %v271 = vadd.f32 %v209, %v270
    %v272 = vpop.f32.mrb[0].mxu0
    %v273 = vpop.f32.mrb[0].mxu0
    %v274 = vadd.f32 %v209, %v273
    %v275 = vpop.f32.mrb[0].mxu0
    %276 = vdwg.mxu0
    %v277 = vmax.f32 %v263, 0.0
    %v278 = vmax.f32 %v266, 0.0
    %v279 = vmax.f32 %v271, 0.0
    %v280 = vmax.f32 %v274, 0.0
    %v281 = vpack.c.bf16 %v278, %v277
    %v282 = vpack.c.bf16 %v280, %v279
    %v283 = vld [vmem:[%s3 + $0x10] sm:$0xf]
    %v284 = vld [vmem:[%s3 + $0x14] sm:$0xf]
    %v285 = vld [vmem:[%s3 + $0x18] sm:$0xf]
    %v286 = vld [vmem:[%s3 + $0x1c] sm:$0xf]
    %v287 = vld [vmem:[%s4 + $0x1] sm:$0x1]
    %v288 = vlaneseq
    %v289 = vshrl.u32 %v288, 7
    %v290 = vsub.s32 0, %v289
    %v291 = vrot.slane %v287, %v290
    %v296 = vunpack.c.l.b16 %v283
    %v297 = vunpack.c.l.b16 %v284
    %v298 = vunpack.c.l.b16 %v285
    %v299 = vunpack.c.l.b16 %v286
    %v300 = vpack.c.b16 %v297, %v296
    %v301 = vpack.c.b16 %v299, %v298
    %v305 = vsel %vm57, %v281, 0
    %v308 = vsel %vm57, %v282, 0
    %310 = vmatprep.subr.bf16.mxu0 0
    %311 = vmatpush1.bf16.msra.mxu0 %v300
    %312 = vmatprep.subr.bf16.mxu0 0
    %313 = vmatpush1.bf16.msra.mxu0 %v301
    %314 = vmatprep.subr.bf16.mxu0 0
    %315 = vmatpush1.bf16.msra.mxu0 0
    %316 = vmatprep.subr.bf16.mxu0 0
    %317 = vmatpush1.bf16.msra.mxu0 0
    %318 = vmatprep.subr.bf16.mxu0 0
    %319 = vmatpush1.bf16.msra.mxu0 0
    %320 = vmatprep.subr.bf16.mxu0 0
    %321 = vmatpush1.bf16.msra.mxu0 0
    %322 = vmatprep.subr.bf16.mxu0 0
    %323 = vmatpush1.bf16.msra.mxu0 0
    %324 = vmatprep.subr.bf16.mxu0 0
    %325 = vmatpush1.bf16.msra.mxu0 0
    %326 = vmatprep.subr.bf16.mxu0 0
    %327 = vmatpush1.bf16.msra.mxu0 0
    %328 = vmatprep.subr.bf16.mxu0 0
    %329 = vmatpush1.bf16.msra.mxu0 0
    %330 = vmatprep.subr.bf16.mxu0 0
    %331 = vmatpush1.bf16.msra.mxu0 0
    %332 = vmatprep.subr.bf16.mxu0 0
    %333 = vmatpush1.bf16.msra.mxu0 0
    %334 = vmatprep.subr.bf16.mxu0 0
    %335 = vmatpush1.bf16.msra.mxu0 0
    %336 = vmatprep.subr.bf16.mxu0 0
    %337 = vmatpush1.bf16.msra.mxu0 0
    %338 = vmatprep.subr.bf16.mxu0 0
    %339 = vmatpush1.bf16.msra.mxu0 0
    %340 = vmatprep.subr.bf16.mxu0 0
    %341 = vmatpush1.bf16.msra.mxu0 0
    %342 = vmatprep.mubr.bf16.mxu0 0
    %343 = vmatmul.mubr.bf16.gmra.mrb[0].mxu0 %v305
    %v344 = vpop.f32.mrb[0].mxu0
    %v345 = vadd.f32 %v291, %v344
    %v346 = vpop.f32.mrb[0].mxu0
    %v347 = vpop.f32.mrb[0].mxu0
    %v348 = vadd.f32 %v291, %v347
    %v349 = vpop.f32.mrb[0].mxu0
    %350 = vmatprep.mubr.bf16.mxu0 0
    %351 = vmatmul.mubr.bf16.gmra.mrb[0].mxu0 %v308
    %v352 = vpop.f32.mrb[0].mxu0
    %v353 = vadd.f32 %v291, %v352
    %v354 = vpop.f32.mrb[0].mxu0
    %v355 = vpop.f32.mrb[0].mxu0
    %v356 = vadd.f32 %v291, %v355
    %v357 = vpop.f32.mrb[0].mxu0
    %358 = vdwg.mxu0
    %v359 = vmax.f32 %v345, 0.0
    %v360 = vmax.f32 %v348, 0.0
    %v361 = vmax.f32 %v353, 0.0
    %v362 = vmax.f32 %v356, 0.0
    %v363 = vpack.c.bf16 %v188, %v185
    %v364 = vpack.c.bf16 %v196, %v193
    %v365 = vld [vmem:[%s3 + $0x20] sm:$0xf]
    %v366 = vld [vmem:[%s3 + $0x24] sm:$0xf]
    %v367 = vld [vmem:[%s3 + $0x28] sm:$0xf]
    %v368 = vld [vmem:[%s3 + $0x2c] sm:$0xf]
    %v369 = vld [vmem:[%s4 + $0x2] sm:$0x1]
    %v370 = vlaneseq
    %v371 = vshrl.u32 %v370, 7
    %v372 = vsub.s32 0, %v371
    %v373 = vrot.slane %v369, %v372
    %v378 = vunpack.c.l.b16 %v365
    %v379 = vunpack.c.l.b16 %v366
    %v380 = vunpack.c.l.b16 %v367
    %v381 = vunpack.c.l.b16 %v368
    %v382 = vpack.c.b16 %v379, %v378
    %v383 = vpack.c.b16 %v381, %v380
    %v387 = vsel %vm57, %v363, 0
    %v390 = vsel %vm57, %v364, 0
    %392 = vmatprep.subr.bf16.mxu0 0
    %393 = vmatpush1.bf16.msra.mxu0 %v382
    %394 = vmatprep.subr.bf16.mxu0 0
    %395 = vmatpush1.bf16.msra.mxu0 %v383
    %396 = vmatprep.subr.bf16.mxu0 0
    %397 = vmatpush1.bf16.msra.mxu0 0
    %398 = vmatprep.subr.bf16.mxu0 0
    %399 = vmatpush1.bf16.msra.mxu0 0
    %400 = vmatprep.subr.bf16.mxu0 0
    %401 = vmatpush1.bf16.msra.mxu0 0
    %402 = vmatprep.subr.bf16.mxu0 0
    %403 = vmatpush1.bf16.msra.mxu0 0
    %404 = vmatprep.subr.bf16.mxu0 0
    %405 = vmatpush1.bf16.msra.mxu0 0
    %406 = vmatprep.subr.bf16.mxu0 0
    %407 = vmatpush1.bf16.msra.mxu0 0
    %408 = vmatprep.subr.bf16.mxu0 0
    %409 = vmatpush1.bf16.msra.mxu0 0
    %410 = vmatprep.subr.bf16.mxu0 0
    %411 = vmatpush1.bf16.msra.mxu0 0
    %412 = vmatprep.subr.bf16.mxu0 0
    %413 = vmatpush1.bf16.msra.mxu0 0
    %414 = vmatprep.subr.bf16.mxu0 0
    %415 = vmatpush1.bf16.msra.mxu0 0
    %416 = vmatprep.subr.bf16.mxu0 0
    %417 = vmatpush1.bf16.msra.mxu0 0
    %418 = vmatprep.subr.bf16.mxu0 0
    %419 = vmatpush1.bf16.msra.mxu0 0
    %420 = vmatprep.subr.bf16.mxu0 0
    %421 = vmatpush1.bf16.msra.mxu0 0
    %422 = vmatprep.subr.bf16.mxu0 0
    %423 = vmatpush1.bf16.msra.mxu0 0
    %424 = vmatprep.mubr.bf16.mxu0 0
    %425 = vmatmul.mubr.bf16.gmra.mrb[0].mxu0 %v387
    %v426 = vpop.f32.mrb[0].mxu0
    %v427 = vadd.f32 %v373, %v426
    %v428 = vpop.f32.mrb[0].mxu0
    %v429 = vpop.f32.mrb[0].mxu0
    %v430 = vadd.f32 %v373, %v429
    %v431 = vpop.f32.mrb[0].mxu0
    %432 = vmatprep.mubr.bf16.mxu0 0
    %433 = vmatmul.mubr.bf16.gmra.mrb[0].mxu0 %v390
    %v434 = vpop.f32.mrb[0].mxu0
    %v435 = vadd.f32 %v373, %v434
    %v436 = vpop.f32.mrb[0].mxu0
    %v437 = vpop.f32.mrb[0].mxu0
    %v438 = vadd.f32 %v373, %v437
    %v439 = vpop.f32.mrb[0].mxu0
    %440 = vdwg.mxu0
    %v441 = vmax.f32 %v427, 0.0
    %v442 = vmax.f32 %v430, 0.0
    %v443 = vmax.f32 %v435, 0.0
    %v444 = vmax.f32 %v438, 0.0
    %v445 = vpack.c.bf16 %v442, %v441
    %v446 = vpack.c.bf16 %v444, %v443
    %v447 = vld [vmem:[%s3 + $0x30] sm:$0xf]
    %v448 = vld [vmem:[%s3 + $0x34] sm:$0xf]
    %v449 = vld [vmem:[%s3 + $0x38] sm:$0xf]
    %v450 = vld [vmem:[%s3 + $0x3c] sm:$0xf]
    %v451 = vld [vmem:[%s4 + $0x3] sm:$0x1]
    %v452 = vlaneseq
    %v453 = vshrl.u32 %v452, 7
    %v454 = vsub.s32 0, %v453
    %v455 = vrot.slane %v451, %v454
    %v460 = vunpack.c.l.b16 %v447
    %v461 = vunpack.c.l.b16 %v448
    %v462 = vunpack.c.l.b16 %v449
    %v463 = vunpack.c.l.b16 %v450
    %v464 = vpack.c.b16 %v461, %v460
    %v465 = vpack.c.b16 %v463, %v462
    %v469 = vsel %vm57, %v445, 0
    %v472 = vsel %vm57, %v446, 0
    %474 = vmatprep.subr.bf16.mxu0 0
    %475 = vmatpush1.bf16.msra.mxu0 %v464
    %476 = vmatprep.subr.bf16.mxu0 0
    %477 = vmatpush1.bf16.msra.mxu0 %v465
    %478 = vmatprep.subr.bf16.mxu0 0
    %479 = vmatpush1.bf16.msra.mxu0 0
    %480 = vmatprep.subr.bf16.mxu0 0
    %481 = vmatpush1.bf16.msra.mxu0 0
    %482 = vmatprep.subr.bf16.mxu0 0
    %483 = vmatpush1.bf16.msra.mxu0 0
    %484 = vmatprep.subr.bf16.mxu0 0
    %485 = vmatpush1.bf16.msra.mxu0 0
    %486 = vmatprep.subr.bf16.mxu0 0
    %487 = vmatpush1.bf16.msra.mxu0 0
    %488 = vmatprep.subr.bf16.mxu0 0
    %489 = vmatpush1.bf16.msra.mxu0 0
    %490 = vmatprep.subr.bf16.mxu0 0
    %491 = vmatpush1.bf16.msra.mxu0 0
    %492 = vmatprep.subr.bf16.mxu0 0
    %493 = vmatpush1.bf16.msra.mxu0 0
    %494 = vmatprep.subr.bf16.mxu0 0
    %495 = vmatpush1.bf16.msra.mxu0 0
    %496 = vmatprep.subr.bf16.mxu0 0
    %497 = vmatpush1.bf16.msra.mxu0 0
    %498 = vmatprep.subr.bf16.mxu0 0
    %499 = vmatpush1.bf16.msra.mxu0 0
    %500 = vmatprep.subr.bf16.mxu0 0
    %501 = vmatpush1.bf16.msra.mxu0 0
    %502 = vmatprep.subr.bf16.mxu0 0
    %503 = vmatpush1.bf16.msra.mxu0 0
    %504 = vmatprep.subr.bf16.mxu0 0
    %505 = vmatpush1.bf16.msra.mxu0 0
    %506 = vmatprep.mubr.bf16.mxu0 0
    %507 = vmatmul.mubr.bf16.gmra.mrb[0].mxu0 %v469
    %v508 = vpop.f32.mrb[0].mxu0
    %v509 = vadd.f32 %v455, %v508
    %v510 = vpop.f32.mrb[0].mxu0
    %v511 = vpop.f32.mrb[0].mxu0
    %v512 = vadd.f32 %v455, %v511
    %v513 = vpop.f32.mrb[0].mxu0
    %514 = vmatprep.mubr.bf16.mxu0 0
    %515 = vmatmul.mubr.bf16.gmra.mrb[0].mxu0 %v472
    %v516 = vpop.f32.mrb[0].mxu0
    %v517 = vadd.f32 %v455, %v516
    %v518 = vpop.f32.mrb[0].mxu0
    %v519 = vpop.f32.mrb[0].mxu0
    %v520 = vadd.f32 %v455, %v519
    %v521 = vpop.f32.mrb[0].mxu0
    %522 = vdwg.mxu0
    %v523 = vmax.f32 %v509, 0.0
    %v524 = vmax.f32 %v512, 0.0
    %v525 = vmax.f32 %v517, 0.0
    %v526 = vmax.f32 %v520, 0.0
    %v527 = vpack.c.bf16 %v360, %v359
    %v528 = vpack.c.bf16 %v362, %v361
    %v529 = vld [vmem:[%s3 + $0x40] sm:$0xf]
    %v530 = vld [vmem:[%s3 + $0x44] sm:$0xf]
    %v531 = vld [vmem:[%s3 + $0x48] sm:$0xf]
    %v532 = vld [vmem:[%s3 + $0x4c] sm:$0xf]
    %v533 = vpack.c.bf16 %v524, %v523
    %v534 = vpack.c.bf16 %v526, %v525
    %v535 = vld [vmem:[%s3 + $0x50] sm:$0xf]
    %v536 = vld [vmem:[%s3 + $0x54] sm:$0xf]
    %v537 = vld [vmem:[%s3 + $0x58] sm:$0xf]
    %v538 = vld [vmem:[%s3 + $0x5c] sm:$0xf]
    %v543 = vunpack.c.l.b16 %v535
    %v544 = vunpack.c.l.b16 %v536
    %v545 = vunpack.c.l.b16 %v537
    %v546 = vunpack.c.l.b16 %v538
    %v547 = vpack.c.b16 %v544, %v543
    %v548 = vpack.c.b16 %v546, %v545
    %v552 = vsel %vm57, %v533, 0
    %v555 = vsel %vm57, %v534, 0
    %557 = vmatprep.subr.bf16.mxu0 0
    %558 = vmatpush1.bf16.msra.mxu0 %v547
    %559 = vmatprep.subr.bf16.mxu0 0
    %560 = vmatpush1.bf16.msra.mxu0 %v548
    %561 = vmatprep.subr.bf16.mxu0 0
    %562 = vmatpush1.bf16.msra.mxu0 0
    %563 = vmatprep.subr.bf16.mxu0 0
    %564 = vmatpush1.bf16.msra.mxu0 0
    %565 = vmatprep.subr.bf16.mxu0 0
    %566 = vmatpush1.bf16.msra.mxu0 0
    %567 = vmatprep.subr.bf16.mxu0 0
    %568 = vmatpush1.bf16.msra.mxu0 0
    %569 = vmatprep.subr.bf16.mxu0 0
    %570 = vmatpush1.bf16.msra.mxu0 0
    %571 = vmatprep.subr.bf16.mxu0 0
    %572 = vmatpush1.bf16.msra.mxu0 0
    %573 = vmatprep.subr.bf16.mxu0 0
    %574 = vmatpush1.bf16.msra.mxu0 0
    %575 = vmatprep.subr.bf16.mxu0 0
    %576 = vmatpush1.bf16.msra.mxu0 0
    %577 = vmatprep.subr.bf16.mxu0 0
    %578 = vmatpush1.bf16.msra.mxu0 0
    %579 = vmatprep.subr.bf16.mxu0 0
    %580 = vmatpush1.bf16.msra.mxu0 0
    %581 = vmatprep.subr.bf16.mxu0 0
    %582 = vmatpush1.bf16.msra.mxu0 0
    %583 = vmatprep.subr.bf16.mxu0 0
    %584 = vmatpush1.bf16.msra.mxu0 0
    %585 = vmatprep.subr.bf16.mxu0 0
    %586 = vmatpush1.bf16.msra.mxu0 0
    %587 = vmatprep.subr.bf16.mxu0 0
    %588 = vmatpush1.bf16.msra.mxu0 0
    %589 = vmatprep.mubr.bf16.mxu0 0
    %590 = vmatmul.mubr.bf16.gmra.mrb[0].mxu0 %v552
    %v591 = vpop.f32.mrb[0].mxu0
    %v592 = vadd.f32 0.0, %v591
    %v593 = vpop.f32.mrb[0].mxu0
    %v594 = vpop.f32.mrb[0].mxu0
    %v595 = vadd.f32 0.0, %v594
    %v596 = vpop.f32.mrb[0].mxu0
    %597 = vmatprep.mubr.bf16.mxu0 0
    %598 = vmatmul.mubr.bf16.gmra.mrb[0].mxu0 %v555
    %v599 = vpop.f32.mrb[0].mxu0
    %v600 = vadd.f32 0.0, %v599
    %v601 = vpop.f32.mrb[0].mxu0
    %v602 = vpop.f32.mrb[0].mxu0
    %v603 = vadd.f32 0.0, %v602
    %v604 = vpop.f32.mrb[0].mxu0
    %605 = vdwg.mxu0
    %v610 = vunpack.c.l.b16 %v529
    %v611 = vunpack.c.l.b16 %v530
    %v612 = vunpack.c.l.b16 %v531
    %v613 = vunpack.c.l.b16 %v532
    %v614 = vpack.c.b16 %v611, %v610
    %v615 = vpack.c.b16 %v613, %v612
    %v619 = vsel %vm57, %v527, 0
    %v622 = vsel %vm57, %v528, 0
    %624 = vmatprep.subr.bf16.mxu0 0
    %625 = vmatpush1.bf16.msra.mxu0 %v614
    %626 = vmatprep.subr.bf16.mxu0 0
    %627 = vmatpush1.bf16.msra.mxu0 %v615
    %628 = vmatprep.subr.bf16.mxu0 0
    %629 = vmatpush1.bf16.msra.mxu0 0
    %630 = vmatprep.subr.bf16.mxu0 0
    %631 = vmatpush1.bf16.msra.mxu0 0
    %632 = vmatprep.subr.bf16.mxu0 0
    %633 = vmatpush1.bf16.msra.mxu0 0
    %634 = vmatprep.subr.bf16.mxu0 0
    %635 = vmatpush1.bf16.msra.mxu0 0
    %636 = vmatprep.subr.bf16.mxu0 0
    %637 = vmatpush1.bf16.msra.mxu0 0
    %638 = vmatprep.subr.bf16.mxu0 0
    %639 = vmatpush1.bf16.msra.mxu0 0
    %640 = vmatprep.subr.bf16.mxu0 0
    %641 = vmatpush1.bf16.msra.mxu0 0
    %642 = vmatprep.subr.bf16.mxu0 0
    %643 = vmatpush1.bf16.msra.mxu0 0
    %644 = vmatprep.subr.bf16.mxu0 0
    %645 = vmatpush1.bf16.msra.mxu0 0
    %646 = vmatprep.subr.bf16.mxu0 0
    %647 = vmatpush1.bf16.msra.mxu0 0
    %648 = vmatprep.subr.bf16.mxu0 0
    %649 = vmatpush1.bf16.msra.mxu0 0
    %650 = vmatprep.subr.bf16.mxu0 0
    %651 = vmatpush1.bf16.msra.mxu0 0
    %652 = vmatprep.subr.bf16.mxu0 0
    %653 = vmatpush1.bf16.msra.mxu0 0
    %654 = vmatprep.subr.bf16.mxu0 0
    %655 = vmatpush1.bf16.msra.mxu0 0
    %656 = vmatprep.mubr.bf16.mxu0 0
    %657 = vmatmul.mubr.bf16.gmra.mrb[0].mxu0 %v619
    %v658 = vpop.f32.mrb[0].mxu0
    %v659 = vadd.f32 %v592, %v658
    %v660 = vpop.f32.mrb[0].mxu0
    %v661 = vpop.f32.mrb[0].mxu0
    %v662 = vadd.f32 %v595, %v661
    %v663 = vpop.f32.mrb[0].mxu0
    %664 = vmatprep.mubr.bf16.mxu0 0
    %665 = vmatmul.mubr.bf16.gmra.mrb[0].mxu0 %v622
    %v666 = vpop.f32.mrb[0].mxu0
    %v667 = vadd.f32 %v600, %v666
    %v668 = vpop.f32.mrb[0].mxu0
    %v669 = vpop.f32.mrb[0].mxu0
    %v670 = vadd.f32 %v603, %v669
    %v671 = vpop.f32.mrb[0].mxu0
    %672 = vdwg.mxu0
    %v673 = vld [vmem:[%s4 + $0x4] sm:$0x1]
    %v674 = vlaneseq
    %v675 = vshrl.u32 %v674, 7
    %v676 = vsub.s32 0, %v675
    %v677 = vrot.slane %v673, %v676
    %v678 = vadd.f32 %v659, %v677
    %v679 = vadd.f32 %v662, %v677
    %v680 = vadd.f32 %v667, %v677
    %v681 = vadd.f32 %v670, %v677
    %v682 = vmax.f32 %v678, 0.0
    %v683 = vmax.f32 %v679, 0.0
    %v684 = vmax.f32 %v680, 0.0
    %v685 = vmax.f32 %v681, 0.0
    %vm686 = vcmp.lt.s32.totalorder %v23, 16
    %vm687 = vcmp.lt.s32.totalorder %v24, 16
    %vm688 = vcmp.lt.s32.totalorder %v25, 16
    %vm689 = vcmp.lt.s32.totalorder %v26, 16
    %v690 = vsel %vm686, 1, 0
    %v691 = vsel %vm687, 1, 0
    %v692 = vsel %vm688, 1, 0
    %v693 = vsel %vm689, 1, 0
    %vm694 = vcmp.eq.s32.totalorder %v690, 1
    %vm695 = vcmp.eq.s32.totalorder %v691, 1
    %vm696 = vcmp.eq.s32.totalorder %v692, 1
    %vm697 = vcmp.eq.s32.totalorder %v693, 1
    %v698 = vsel %vm694, %v682, 0.0
    %v699 = vsel %vm695, %v683, 0.0
    %v700 = vsel %vm696, %v684, 0.0
    %v701 = vsel %vm697, %v685, 0.0
    %702 = vst.msk [vmem:[#allocation2] sm:$0xff] %vm57, %v698
    %703 = vst.msk [vmem:[#allocation2 + $0x8] sm:$0xff] %vm57, %v699
    %704 = vst.msk [vmem:[#allocation2 + $0x10] sm:$0xff] %vm57, %v700
    %705 = vst.msk [vmem:[#allocation2 + $0x18] sm:$0xff] %vm57, %v701
    %s706 = scalar_lea.vmem %s0, 32
    %v707 = vld [vmem:[%s706 + $0x10] sm:$0xf]
    %v708 = vld [vmem:[%s706 + $0x14] sm:$0xf]
    %v709 = vld [vmem:[%s706 + $0x18] sm:$0xf]
    %v710 = vld [vmem:[%s706 + $0x1c] sm:$0xf]
    %s711 = scalar_lea.vmem %s1, 16
    %v712 = vld [vmem:[%s711] sm:$0xf]
    %v713 = vld [vmem:[%s711 + $0x4] sm:$0xf]
    %v714 = vld [vmem:[%s711 + $0x8] sm:$0xf]
    %v715 = vld [vmem:[%s711 + $0xc] sm:$0xf]
    %v720 = vunpack.c.l.b16 %v712
    %v721 = vunpack.c.l.b16 %v713
    %v722 = vunpack.c.l.b16 %v714
    %v723 = vunpack.c.l.b16 %v715
    %v724 = vpack.c.b16 %v721, %v720
    %v725 = vpack.c.b16 %v723, %v722
    %v730 = vunpack.c.l.b16 %v707
    %v731 = vunpack.c.l.b16 %v708
    %v732 = vunpack.c.l.b16 %v709
    %v733 = vunpack.c.l.b16 %v710
    %v734 = vpack.c.b16 %v731, %v730
    %v735 = vpack.c.b16 %v733, %v732
    %v739 = vsel %vm57, %v724, 0
    %v742 = vsel %vm57, %v725, 0
    %744 = vmatprep.subr.bf16.mxu0 0
    %745 = vmatpush1.bf16.msra.mxu0 %v734
    %746 = vmatprep.subr.bf16.mxu0 0
    %747 = vmatpush1.bf16.msra.mxu0 %v735
    %748 = vmatprep.subr.bf16.mxu0 0
    %749 = vmatpush1.bf16.msra.mxu0 0
    %750 = vmatprep.subr.bf16.mxu0 0
    %751 = vmatpush1.bf16.msra.mxu0 0
    %752 = vmatprep.subr.bf16.mxu0 0
    %753 = vmatpush1.bf16.msra.mxu0 0
    %754 = vmatprep.subr.bf16.mxu0 0
    %755 = vmatpush1.bf16.msra.mxu0 0
    %756 = vmatprep.subr.bf16.mxu0 0
    %757 = vmatpush1.bf16.msra.mxu0 0
    %758 = vmatprep.subr.bf16.mxu0 0
    %759 = vmatpush1.bf16.msra.mxu0 0
    %760 = vmatprep.subr.bf16.mxu0 0
    %761 = vmatpush1.bf16.msra.mxu0 0
    %762 = vmatprep.subr.bf16.mxu0 0
    %763 = vmatpush1.bf16.msra.mxu0 0
    %764 = vmatprep.subr.bf16.mxu0 0
    %765 = vmatpush1.bf16.msra.mxu0 0
    %766 = vmatprep.subr.bf16.mxu0 0
    %767 = vmatpush1.bf16.msra.mxu0 0
    %768 = vmatprep.subr.bf16.mxu0 0
    %769 = vmatpush1.bf16.msra.mxu0 0
    %770 = vmatprep.subr.bf16.mxu0 0
    %771 = vmatpush1.bf16.msra.mxu0 0
    %772 = vmatprep.subr.bf16.mxu0 0
    %773 = vmatpush1.bf16.msra.mxu0 0
    %774 = vmatprep.subr.bf16.mxu0 0
    %775 = vmatpush1.bf16.msra.mxu0 0
    %776 = vmatprep.mubr.bf16.mxu0 0
    %777 = vmatmul.mubr.bf16.gmra.mrb[0].mxu0 %v739
    %v778 = vpop.f32.mrb[0].mxu0
    %v779 = vadd.f32 0.0, %v778
    %v780 = vpop.f32.mrb[0].mxu0
    %v781 = vpop.f32.mrb[0].mxu0
    %v782 = vadd.f32 0.0, %v781
    %v783 = vpop.f32.mrb[0].mxu0
    %784 = vmatprep.mubr.bf16.mxu0 0
    %785 = vmatmul.mubr.bf16.gmra.mrb[0].mxu0 %v742
    %v786 = vpop.f32.mrb[0].mxu0
    %v787 = vadd.f32 0.0, %v786
    %v788 = vpop.f32.mrb[0].mxu0
    %v789 = vpop.f32.mrb[0].mxu0
    %v790 = vadd.f32 0.0, %v789
    %v791 = vpop.f32.mrb[0].mxu0
    %792 = vdwg.mxu0
    %s793 = scalar_lea.vmem %s2, 16
    %v794 = vld [vmem:[%s793] sm:$0xf]
    %v795 = vld [vmem:[%s793 + $0x4] sm:$0xf]
    %v796 = vld [vmem:[%s793 + $0x8] sm:$0xf]
    %v797 = vld [vmem:[%s793 + $0xc] sm:$0xf]
    %v798 = vld [vmem:[%s706] sm:$0xf]
    %v799 = vld [vmem:[%s706 + $0x4] sm:$0xf]
    %v800 = vld [vmem:[%s706 + $0x8] sm:$0xf]
    %v801 = vld [vmem:[%s706 + $0xc] sm:$0xf]
    %v806 = vunpack.c.l.b16 %v794
    %v807 = vunpack.c.l.b16 %v795
    %v808 = vunpack.c.l.b16 %v796
    %v809 = vunpack.c.l.b16 %v797
    %v810 = vpack.c.b16 %v807, %v806
    %v811 = vpack.c.b16 %v809, %v808
    %v816 = vunpack.c.l.b16 %v798
    %v817 = vunpack.c.l.b16 %v799
    %v818 = vunpack.c.l.b16 %v800
    %v819 = vunpack.c.l.b16 %v801
    %v820 = vpack.c.b16 %v817, %v816
    %v821 = vpack.c.b16 %v819, %v818
    %v825 = vsel %vm143, %v810, 0
    %v828 = vsel %vm143, %v811, 0
    %830 = vmatprep.subr.bf16.mxu0 0
    %831 = vmatpush1.bf16.msra.mxu0 %v820
    %832 = vmatprep.subr.bf16.mxu0 0
    %833 = vmatpush1.bf16.msra.mxu0 %v821
    %834 = vmatprep.subr.bf16.mxu0 0
    %835 = vmatpush1.bf16.msra.mxu0 %v734
    %836 = vmatprep.subr.bf16.mxu0 0
    %837 = vmatpush1.bf16.msra.mxu0 %v735
    %838 = vmatprep.subr.bf16.mxu0 0
    %839 = vmatpush1.bf16.msra.mxu0 0
    %840 = vmatprep.subr.bf16.mxu0 0
    %841 = vmatpush1.bf16.msra.mxu0 0
    %842 = vmatprep.subr.bf16.mxu0 0
    %843 = vmatpush1.bf16.msra.mxu0 0
    %844 = vmatprep.subr.bf16.mxu0 0
    %845 = vmatpush1.bf16.msra.mxu0 0
    %846 = vmatprep.subr.bf16.mxu0 0
    %847 = vmatpush1.bf16.msra.mxu0 0
    %848 = vmatprep.subr.bf16.mxu0 0
    %849 = vmatpush1.bf16.msra.mxu0 0
    %850 = vmatprep.subr.bf16.mxu0 0
    %851 = vmatpush1.bf16.msra.mxu0 0
    %852 = vmatprep.subr.bf16.mxu0 0
    %853 = vmatpush1.bf16.msra.mxu0 0
    %854 = vmatprep.subr.bf16.mxu0 0
    %855 = vmatpush1.bf16.msra.mxu0 0
    %856 = vmatprep.subr.bf16.mxu0 0
    %857 = vmatpush1.bf16.msra.mxu0 0
    %858 = vmatprep.subr.bf16.mxu0 0
    %859 = vmatpush1.bf16.msra.mxu0 0
    %860 = vmatprep.subr.bf16.mxu0 0
    %861 = vmatpush1.bf16.msra.mxu0 0
    %862 = vmatprep.mubr.bf16.mxu0 0
    %863 = vmatmul.mubr.bf16.gmra.mrb[0].mxu0 %v825
    %v864 = vpop.f32.mrb[0].mxu0
    %v865 = vadd.f32 0.0, %v864
    %v866 = vpop.f32.mrb[0].mxu0
    %v867 = vpop.f32.mrb[0].mxu0
    %v868 = vadd.f32 0.0, %v867
    %v869 = vpop.f32.mrb[0].mxu0
    %870 = vmatprep.mubr.bf16.mxu0 0
    %871 = vmatmul.mubr.bf16.gmra.mrb[0].mxu0 %v828
    %v872 = vpop.f32.mrb[0].mxu0
    %v873 = vadd.f32 0.0, %v872
    %v874 = vpop.f32.mrb[0].mxu0
    %v875 = vpop.f32.mrb[0].mxu0
    %v876 = vadd.f32 0.0, %v875
    %v877 = vpop.f32.mrb[0].mxu0
    %878 = vdwg.mxu0
    %v879 = vpack.c.bf16 %v782, %v779
    %v880 = vpack.c.bf16 %v790, %v787
    %s881 = scalar_lea.vmem %s3, 96
    %v882 = vld [vmem:[%s881] sm:$0xf]
    %v883 = vld [vmem:[%s881 + $0x4] sm:$0xf]
    %v884 = vld [vmem:[%s881 + $0x8] sm:$0xf]
    %v885 = vld [vmem:[%s881 + $0xc] sm:$0xf]
    %s886 = scalar_lea.vmem %s4, 8
    %v887 = vld [vmem:[%s886] sm:$0x1]
    %v888 = vlaneseq
    %v889 = vshrl.u32 %v888, 7
    %v890 = vsub.s32 0, %v889
    %v891 = vrot.slane %v887, %v890
    %v896 = vunpack.c.l.b16 %v882
    %v897 = vunpack.c.l.b16 %v883
    %v898 = vunpack.c.l.b16 %v884
    %v899 = vunpack.c.l.b16 %v885
    %v900 = vpack.c.b16 %v897, %v896
    %v901 = vpack.c.b16 %v899, %v898
    %v905 = vsel %vm57, %v879, 0
    %v908 = vsel %vm57, %v880, 0
    %910 = vmatprep.subr.bf16.mxu0 0
    %911 = vmatpush1.bf16.msra.mxu0 %v900
    %912 = vmatprep.subr.bf16.mxu0 0
    %913 = vmatpush1.bf16.msra.mxu0 %v901
    %914 = vmatprep.subr.bf16.mxu0 0
    %915 = vmatpush1.bf16.msra.mxu0 0
    %916 = vmatprep.subr.bf16.mxu0 0
    %917 = vmatpush1.bf16.msra.mxu0 0
    %918 = vmatprep.subr.bf16.mxu0 0
    %919 = vmatpush1.bf16.msra.mxu0 0
    %920 = vmatprep.subr.bf16.mxu0 0
    %921 = vmatpush1.bf16.msra.mxu0 0
    %922 = vmatprep.subr.bf16.mxu0 0
    %923 = vmatpush1.bf16.msra.mxu0 0
    %924 = vmatprep.subr.bf16.mxu0 0
    %925 = vmatpush1.bf16.msra.mxu0 0
    %926 = vmatprep.subr.bf16.mxu0 0
    %927 = vmatpush1.bf16.msra.mxu0 0
    %928 = vmatprep.subr.bf16.mxu0 0
    %929 = vmatpush1.bf16.msra.mxu0 0
    %930 = vmatprep.subr.bf16.mxu0 0
    %931 = vmatpush1.bf16.msra.mxu0 0
    %932 = vmatprep.subr.bf16.mxu0 0
    %933 = vmatpush1.bf16.msra.mxu0 0
    %934 = vmatprep.subr.bf16.mxu0 0
    %935 = vmatpush1.bf16.msra.mxu0 0
    %936 = vmatprep.subr.bf16.mxu0 0
    %937 = vmatpush1.bf16.msra.mxu0 0
    %938 = vmatprep.subr.bf16.mxu0 0
    %939 = vmatpush1.bf16.msra.mxu0 0
    %940 = vmatprep.subr.bf16.mxu0 0
    %941 = vmatpush1.bf16.msra.mxu0 0
    %942 = vmatprep.mubr.bf16.mxu0 0
    %943 = vmatmul.mubr.bf16.gmra.mrb[0].mxu0 %v905
    %v944 = vpop.f32.mrb[0].mxu0
    %v945 = vadd.f32 %v891, %v944
    %v946 = vpop.f32.mrb[0].mxu0
    %v947 = vpop.f32.mrb[0].mxu0
    %v948 = vadd.f32 %v891, %v947
    %v949 = vpop.f32.mrb[0].mxu0
    %950 = vmatprep.mubr.bf16.mxu0 0
    %951 = vmatmul.mubr.bf16.gmra.mrb[0].mxu0 %v908
    %v952 = vpop.f32.mrb[0].mxu0
    %v953 = vadd.f32 %v891, %v952
    %v954 = vpop.f32.mrb[0].mxu0
    %v955 = vpop.f32.mrb[0].mxu0
    %v956 = vadd.f32 %v891, %v955
    %v957 = vpop.f32.mrb[0].mxu0
    %958 = vdwg.mxu0
    %v959 = vmax.f32 %v945, 0.0
    %v960 = vmax.f32 %v948, 0.0
    %v961 = vmax.f32 %v953, 0.0
    %v962 = vmax.f32 %v956, 0.0
    %v963 = vpack.c.bf16 %v960, %v959
    %v964 = vpack.c.bf16 %v962, %v961
    %v965 = vld [vmem:[%s881 + $0x10] sm:$0xf]
    %v966 = vld [vmem:[%s881 + $0x14] sm:$0xf]
    %v967 = vld [vmem:[%s881 + $0x18] sm:$0xf]
    %v968 = vld [vmem:[%s881 + $0x1c] sm:$0xf]
    %v969 = vld [vmem:[%s886 + $0x1] sm:$0x1]
    %v970 = vlaneseq
    %v971 = vshrl.u32 %v970, 7
    %v972 = vsub.s32 0, %v971
    %v973 = vrot.slane %v969, %v972
    %v978 = vunpack.c.l.b16 %v965
    %v979 = vunpack.c.l.b16 %v966
    %v980 = vunpack.c.l.b16 %v967
    %v981 = vunpack.c.l.b16 %v968
    %v982 = vpack.c.b16 %v979, %v978
    %v983 = vpack.c.b16 %v981, %v980
    %v987 = vsel %vm57, %v963, 0
    %v990 = vsel %vm57, %v964, 0
    %992 = vmatprep.subr.bf16.mxu0 0
    %993 = vmatpush1.bf16.msra.mxu0 %v982
    %994 = vmatprep.subr.bf16.mxu0 0
    %995 = vmatpush1.bf16.msra.mxu0 %v983
    %996 = vmatprep.subr.bf16.mxu0 0
    %997 = vmatpush1.bf16.msra.mxu0 0
    %998 = vmatprep.subr.bf16.mxu0 0
    %999 = vmatpush1.bf16.msra.mxu0 0
    %1000 = vmatprep.subr.bf16.mxu0 0
    %1001 = vmatpush1.bf16.msra.mxu0 0
    %1002 = vmatprep.subr.bf16.mxu0 0
    %1003 = vmatpush1.bf16.msra.mxu0 0
    %1004 = vmatprep.subr.bf16.mxu0 0
    %1005 = vmatpush1.bf16.msra.mxu0 0
    %1006 = vmatprep.subr.bf16.mxu0 0
    %1007 = vmatpush1.bf16.msra.mxu0 0
    %1008 = vmatprep.subr.bf16.mxu0 0
    %1009 = vmatpush1.bf16.msra.mxu0 0
    %1010 = vmatprep.subr.bf16.mxu0 0
    %1011 = vmatpush1.bf16.msra.mxu0 0
    %1012 = vmatprep.subr.bf16.mxu0 0
    %1013 = vmatpush1.bf16.msra.mxu0 0
    %1014 = vmatprep.subr.bf16.mxu0 0
    %1015 = vmatpush1.bf16.msra.mxu0 0
    %1016 = vmatprep.subr.bf16.mxu0 0
    %1017 = vmatpush1.bf16.msra.mxu0 0
    %1018 = vmatprep.subr.bf16.mxu0 0
    %1019 = vmatpush1.bf16.msra.mxu0 0
    %1020 = vmatprep.subr.bf16.mxu0 0
    %1021 = vmatpush1.bf16.msra.mxu0 0
    %1022 = vmatprep.subr.bf16.mxu0 0
    %1023 = vmatpush1.bf16.msra.mxu0 0
    %1024 = vmatprep.mubr.bf16.mxu0 0
    %1025 = vmatmul.mubr.bf16.gmra.mrb[0].mxu0 %v987
    %v1026 = vpop.f32.mrb[0].mxu0
    %v1027 = vadd.f32 %v973, %v1026
    %v1028 = vpop.f32.mrb[0].mxu0
    %v1029 = vpop.f32.mrb[0].mxu0
    %v1030 = vadd.f32 %v973, %v1029
    %v1031 = vpop.f32.mrb[0].mxu0
    %1032 = vmatprep.mubr.bf16.mxu0 0
    %1033 = vmatmul.mubr.bf16.gmra.mrb[0].mxu0 %v990
    %v1034 = vpop.f32.mrb[0].mxu0
    %v1035 = vadd.f32 %v973, %v1034
    %v1036 = vpop.f32.mrb[0].mxu0
    %v1037 = vpop.f32.mrb[0].mxu0
    %v1038 = vadd.f32 %v973, %v1037
    %v1039 = vpop.f32.mrb[0].mxu0
    %1040 = vdwg.mxu0
    %v1041 = vmax.f32 %v1027, 0.0
    %v1042 = vmax.f32 %v1030, 0.0
    %v1043 = vmax.f32 %v1035, 0.0
    %v1044 = vmax.f32 %v1038, 0.0
    %v1045 = vpack.c.bf16 %v868, %v865
    %v1046 = vpack.c.bf16 %v876, %v873
    %v1047 = vld [vmem:[%s881 + $0x20] sm:$0xf]
    %v1048 = vld [vmem:[%s881 + $0x24] sm:$0xf]
    %v1049 = vld [vmem:[%s881 + $0x28] sm:$0xf]
    %v1050 = vld [vmem:[%s881 + $0x2c] sm:$0xf]
    %v1051 = vld [vmem:[%s886 + $0x2] sm:$0x1]
    %v1052 = vlaneseq
    %v1053 = vshrl.u32 %v1052, 7
    %v1054 = vsub.s32 0, %v1053
    %v1055 = vrot.slane %v1051, %v1054
    %v1060 = vunpack.c.l.b16 %v1047
    %v1061 = vunpack.c.l.b16 %v1048
    %v1062 = vunpack.c.l.b16 %v1049
    %v1063 = vunpack.c.l.b16 %v1050
    %v1064 = vpack.c.b16 %v1061, %v1060
    %v1065 = vpack.c.b16 %v1063, %v1062
    %v1069 = vsel %vm57, %v1045, 0
    %v1072 = vsel %vm57, %v1046, 0
    %1074 = vmatprep.subr.bf16.mxu0 0
    %1075 = vmatpush1.bf16.msra.mxu0 %v1064
    %1076 = vmatprep.subr.bf16.mxu0 0
    %1077 = vmatpush1.bf16.msra.mxu0 %v1065
    %1078 = vmatprep.subr.bf16.mxu0 0
    %1079 = vmatpush1.bf16.msra.mxu0 0
    %1080 = vmatprep.subr.bf16.mxu0 0
    %1081 = vmatpush1.bf16.msra.mxu0 0
    %1082 = vmatprep.subr.bf16.mxu0 0
    %1083 = vmatpush1.bf16.msra.mxu0 0
    %1084 = vmatprep.subr.bf16.mxu0 0
    %1085 = vmatpush1.bf16.msra.mxu0 0
    %1086 = vmatprep.subr.bf16.mxu0 0
    %1087 = vmatpush1.bf16.msra.mxu0 0
    %1088 = vmatprep.subr.bf16.mxu0 0
    %1089 = vmatpush1.bf16.msra.mxu0 0
    %1090 = vmatprep.subr.bf16.mxu0 0
    %1091 = vmatpush1.bf16.msra.mxu0 0
    %1092 = vmatprep.subr.bf16.mxu0 0
    %1093 = vmatpush1.bf16.msra.mxu0 0
    %1094 = vmatprep.subr.bf16.mxu0 0
    %1095 = vmatpush1.bf16.msra.mxu0 0
    %1096 = vmatprep.subr.bf16.mxu0 0
    %1097 = vmatpush1.bf16.msra.mxu0 0
    %1098 = vmatprep.subr.bf16.mxu0 0
    %1099 = vmatpush1.bf16.msra.mxu0 0
    %1100 = vmatprep.subr.bf16.mxu0 0
    %1101 = vmatpush1.bf16.msra.mxu0 0
    %1102 = vmatprep.subr.bf16.mxu0 0
    %1103 = vmatpush1.bf16.msra.mxu0 0
    %1104 = vmatprep.subr.bf16.mxu0 0
    %1105 = vmatpush1.bf16.msra.mxu0 0
    %1106 = vmatprep.mubr.bf16.mxu0 0
    %1107 = vmatmul.mubr.bf16.gmra.mrb[0].mxu0 %v1069
    %v1108 = vpop.f32.mrb[0].mxu0
    %v1109 = vadd.f32 %v1055, %v1108
    %v1110 = vpop.f32.mrb[0].mxu0
    %v1111 = vpop.f32.mrb[0].mxu0
    %v1112 = vadd.f32 %v1055, %v1111
    %v1113 = vpop.f32.mrb[0].mxu0
    %1114 = vmatprep.mubr.bf16.mxu0 0
    %1115 = vmatmul.mubr.bf16.gmra.mrb[0].mxu0 %v1072
    %v1116 = vpop.f32.mrb[0].mxu0
    %v1117 = vadd.f32 %v1055, %v1116
    %v1118 = vpop.f32.mrb[0].mxu0
    %v1119 = vpop.f32.mrb[0].mxu0
    %v1120 = vadd.f32 %v1055, %v1119
    %v1121 = vpop.f32.mrb[0].mxu0
    %1122 = vdwg.mxu0
    %v1123 = vmax.f32 %v1109, 0.0
    %v1124 = vmax.f32 %v1112, 0.0
    %v1125 = vmax.f32 %v1117, 0.0
    %v1126 = vmax.f32 %v1120, 0.0
    %v1127 = vpack.c.bf16 %v1124, %v1123
    %v1128 = vpack.c.bf16 %v1126, %v1125
    %v1129 = vld [vmem:[%s881 + $0x30] sm:$0xf]
    %v1130 = vld [vmem:[%s881 + $0x34] sm:$0xf]
    %v1131 = vld [vmem:[%s881 + $0x38] sm:$0xf]
    %v1132 = vld [vmem:[%s881 + $0x3c] sm:$0xf]
    %v1133 = vld [vmem:[%s886 + $0x3] sm:$0x1]
    %v1134 = vlaneseq
    %v1135 = vshrl.u32 %v1134, 7
    %v1136 = vsub.s32 0, %v1135
    %v1137 = vrot.slane %v1133, %v1136
    %v1142 = vunpack.c.l.b16 %v1129
    %v1143 = vunpack.c.l.b16 %v1130
    %v1144 = vunpack.c.l.b16 %v1131
    %v1145 = vunpack.c.l.b16 %v1132
    %v1146 = vpack.c.b16 %v1143, %v1142
    %v1147 = vpack.c.b16 %v1145, %v1144
    %v1151 = vsel %vm57, %v1127, 0
    %v1154 = vsel %vm57, %v1128, 0
    %1156 = vmatprep.subr.bf16.mxu0 0
    %1157 = vmatpush1.bf16.msra.mxu0 %v1146
    %1158 = vmatprep.subr.bf16.mxu0 0
    %1159 = vmatpush1.bf16.msra.mxu0 %v1147
    %1160 = vmatprep.subr.bf16.mxu0 0
    %1161 = vmatpush1.bf16.msra.mxu0 0
    %1162 = vmatprep.subr.bf16.mxu0 0
    %1163 = vmatpush1.bf16.msra.mxu0 0
    %1164 = vmatprep.subr.bf16.mxu0 0
    %1165 = vmatpush1.bf16.msra.mxu0 0
    %1166 = vmatprep.subr.bf16.mxu0 0
    %1167 = vmatpush1.bf16.msra.mxu0 0
    %1168 = vmatprep.subr.bf16.mxu0 0
    %1169 = vmatpush1.bf16.msra.mxu0 0
    %1170 = vmatprep.subr.bf16.mxu0 0
    %1171 = vmatpush1.bf16.msra.mxu0 0
    %1172 = vmatprep.subr.bf16.mxu0 0
    %1173 = vmatpush1.bf16.msra.mxu0 0
    %1174 = vmatprep.subr.bf16.mxu0 0
    %1175 = vmatpush1.bf16.msra.mxu0 0
    %1176 = vmatprep.subr.bf16.mxu0 0
    %1177 = vmatpush1.bf16.msra.mxu0 0
    %1178 = vmatprep.subr.bf16.mxu0 0
    %1179 = vmatpush1.bf16.msra.mxu0 0
    %1180 = vmatprep.subr.bf16.mxu0 0
    %1181 = vmatpush1.bf16.msra.mxu0 0
    %1182 = vmatprep.subr.bf16.mxu0 0
    %1183 = vmatpush1.bf16.msra.mxu0 0
    %1184 = vmatprep.subr.bf16.mxu0 0
    %1185 = vmatpush1.bf16.msra.mxu0 0
    %1186 = vmatprep.subr.bf16.mxu0 0
    %1187 = vmatpush1.bf16.msra.mxu0 0
    %1188 = vmatprep.mubr.bf16.mxu0 0
    %1189 = vmatmul.mubr.bf16.gmra.mrb[0].mxu0 %v1151
    %v1190 = vpop.f32.mrb[0].mxu0
    %v1191 = vadd.f32 %v1137, %v1190
    %v1192 = vpop.f32.mrb[0].mxu0
    %v1193 = vpop.f32.mrb[0].mxu0
    %v1194 = vadd.f32 %v1137, %v1193
    %v1195 = vpop.f32.mrb[0].mxu0
    %1196 = vmatprep.mubr.bf16.mxu0 0
    %1197 = vmatmul.mubr.bf16.gmra.mrb[0].mxu0 %v1154
    %v1198 = vpop.f32.mrb[0].mxu0
    %v1199 = vadd.f32 %v1137, %v1198
    %v1200 = vpop.f32.mrb[0].mxu0
    %v1201 = vpop.f32.mrb[0].mxu0
    %v1202 = vadd.f32 %v1137, %v1201
    %v1203 = vpop.f32.mrb[0].mxu0
    %1204 = vdwg.mxu0
    %v1205 = vmax.f32 %v1191, 0.0
    %v1206 = vmax.f32 %v1194, 0.0
    %v1207 = vmax.f32 %v1199, 0.0
    %v1208 = vmax.f32 %v1202, 0.0
    %v1209 = vpack.c.bf16 %v1042, %v1041
    %v1210 = vpack.c.bf16 %v1044, %v1043
    %v1211 = vld [vmem:[%s881 + $0x40] sm:$0xf]
    %v1212 = vld [vmem:[%s881 + $0x44] sm:$0xf]
    %v1213 = vld [vmem:[%s881 + $0x48] sm:$0xf]
    %v1214 = vld [vmem:[%s881 + $0x4c] sm:$0xf]
    %v1215 = vpack.c.bf16 %v1206, %v1205
    %v1216 = vpack.c.bf16 %v1208, %v1207
    %v1217 = vld [vmem:[%s881 + $0x50] sm:$0xf]
    %v1218 = vld [vmem:[%s881 + $0x54] sm:$0xf]
    %v1219 = vld [vmem:[%s881 + $0x58] sm:$0xf]
    %v1220 = vld [vmem:[%s881 + $0x5c] sm:$0xf]
    %v1225 = vunpack.c.l.b16 %v1217
    %v1226 = vunpack.c.l.b16 %v1218
    %v1227 = vunpack.c.l.b16 %v1219
    %v1228 = vunpack.c.l.b16 %v1220
    %v1229 = vpack.c.b16 %v1226, %v1225
    %v1230 = vpack.c.b16 %v1228, %v1227
    %v1234 = vsel %vm57, %v1215, 0
    %v1237 = vsel %vm57, %v1216, 0
    %1239 = vmatprep.subr.bf16.mxu0 0
    %1240 = vmatpush1.bf16.msra.mxu0 %v1229
    %1241 = vmatprep.subr.bf16.mxu0 0
    %1242 = vmatpush1.bf16.msra.mxu0 %v1230
    %1243 = vmatprep.subr.bf16.mxu0 0
    %1244 = vmatpush1.bf16.msra.mxu0 0
    %1245 = vmatprep.subr.bf16.mxu0 0
    %1246 = vmatpush1.bf16.msra.mxu0 0
    %1247 = vmatprep.subr.bf16.mxu0 0
    %1248 = vmatpush1.bf16.msra.mxu0 0
    %1249 = vmatprep.subr.bf16.mxu0 0
    %1250 = vmatpush1.bf16.msra.mxu0 0
    %1251 = vmatprep.subr.bf16.mxu0 0
    %1252 = vmatpush1.bf16.msra.mxu0 0
    %1253 = vmatprep.subr.bf16.mxu0 0
    %1254 = vmatpush1.bf16.msra.mxu0 0
    %1255 = vmatprep.subr.bf16.mxu0 0
    %1256 = vmatpush1.bf16.msra.mxu0 0
    %1257 = vmatprep.subr.bf16.mxu0 0
    %1258 = vmatpush1.bf16.msra.mxu0 0
    %1259 = vmatprep.subr.bf16.mxu0 0
    %1260 = vmatpush1.bf16.msra.mxu0 0
    %1261 = vmatprep.subr.bf16.mxu0 0
    %1262 = vmatpush1.bf16.msra.mxu0 0
    %1263 = vmatprep.subr.bf16.mxu0 0
    %1264 = vmatpush1.bf16.msra.mxu0 0
    %1265 = vmatprep.subr.bf16.mxu0 0
    %1266 = vmatpush1.bf16.msra.mxu0 0
    %1267 = vmatprep.subr.bf16.mxu0 0
    %1268 = vmatpush1.bf16.msra.mxu0 0
    %1269 = vmatprep.subr.bf16.mxu0 0
    %1270 = vmatpush1.bf16.msra.mxu0 0
    %1271 = vmatprep.mubr.bf16.mxu0 0
    %1272 = vmatmul.mubr.bf16.gmra.mrb[0].mxu0 %v1234
    %v1273 = vpop.f32.mrb[0].mxu0
    %v1274 = vadd.f32 0.0, %v1273
    %v1275 = vpop.f32.mrb[0].mxu0
    %v1276 = vpop.f32.mrb[0].mxu0
    %v1277 = vadd.f32 0.0, %v1276
    %v1278 = vpop.f32.mrb[0].mxu0
    %1279 = vmatprep.mubr.bf16.mxu0 0
    %1280 = vmatmul.mubr.bf16.gmra.mrb[0].mxu0 %v1237
    %v1281 = vpop.f32.mrb[0].mxu0
    %v1282 = vadd.f32 0.0, %v1281
    %v1283 = vpop.f32.mrb[0].mxu0
    %v1284 = vpop.f32.mrb[0].mxu0
    %v1285 = vadd.f32 0.0, %v1284
    %v1286 = vpop.f32.mrb[0].mxu0
    %1287 = vdwg.mxu0
    %v1292 = vunpack.c.l.b16 %v1211
    %v1293 = vunpack.c.l.b16 %v1212
    %v1294 = vunpack.c.l.b16 %v1213
    %v1295 = vunpack.c.l.b16 %v1214
    %v1296 = vpack.c.b16 %v1293, %v1292
    %v1297 = vpack.c.b16 %v1295, %v1294
    %v1301 = vsel %vm57, %v1209, 0
    %v1304 = vsel %vm57, %v1210, 0
    %1306 = vmatprep.subr.bf16.mxu0 0
    %1307 = vmatpush1.bf16.msra.mxu0 %v1296
    %1308 = vmatprep.subr.bf16.mxu0 0
    %1309 = vmatpush1.bf16.msra.mxu0 %v1297
    %1310 = vmatprep.subr.bf16.mxu0 0
    %1311 = vmatpush1.bf16.msra.mxu0 0
    %1312 = vmatprep.subr.bf16.mxu0 0
    %1313 = vmatpush1.bf16.msra.mxu0 0
    %1314 = vmatprep.subr.bf16.mxu0 0
    %1315 = vmatpush1.bf16.msra.mxu0 0
    %1316 = vmatprep.subr.bf16.mxu0 0
    %1317 = vmatpush1.bf16.msra.mxu0 0
    %1318 = vmatprep.subr.bf16.mxu0 0
    %1319 = vmatpush1.bf16.msra.mxu0 0
    %1320 = vmatprep.subr.bf16.mxu0 0
    %1321 = vmatpush1.bf16.msra.mxu0 0
    %1322 = vmatprep.subr.bf16.mxu0 0
    %1323 = vmatpush1.bf16.msra.mxu0 0
    %1324 = vmatprep.subr.bf16.mxu0 0
    %1325 = vmatpush1.bf16.msra.mxu0 0
    %1326 = vmatprep.subr.bf16.mxu0 0
    %1327 = vmatpush1.bf16.msra.mxu0 0
    %1328 = vmatprep.subr.bf16.mxu0 0
    %1329 = vmatpush1.bf16.msra.mxu0 0
    %1330 = vmatprep.subr.bf16.mxu0 0
    %1331 = vmatpush1.bf16.msra.mxu0 0
    %1332 = vmatprep.subr.bf16.mxu0 0
    %1333 = vmatpush1.bf16.msra.mxu0 0
    %1334 = vmatprep.subr.bf16.mxu0 0
    %1335 = vmatpush1.bf16.msra.mxu0 0
    %1336 = vmatprep.subr.bf16.mxu0 0
    %1337 = vmatpush1.bf16.msra.mxu0 0
    %1338 = vmatprep.mubr.bf16.mxu0 0
    %1339 = vmatmul.mubr.bf16.gmra.mrb[0].mxu0 %v1301
    %v1340 = vpop.f32.mrb[0].mxu0
    %v1341 = vadd.f32 %v1274, %v1340
    %v1342 = vpop.f32.mrb[0].mxu0
    %v1343 = vpop.f32.mrb[0].mxu0
    %v1344 = vadd.f32 %v1277, %v1343
    %v1345 = vpop.f32.mrb[0].mxu0
    %1346 = vmatprep.mubr.bf16.mxu0 0
    %1347 = vmatmul.mubr.bf16.gmra.mrb[0].mxu0 %v1304
    %v1348 = vpop.f32.mrb[0].mxu0
    %v1349 = vadd.f32 %v1282, %v1348
    %v1350 = vpop.f32.mrb[0].mxu0
    %v1351 = vpop.f32.mrb[0].mxu0
    %v1352 = vadd.f32 %v1285, %v1351
    %v1353 = vpop.f32.mrb[0].mxu0
    %1354 = vdwg.mxu0
    %v1355 = vld [vmem:[%s886 + $0x4] sm:$0x1]
    %v1356 = vlaneseq
    %v1357 = vshrl.u32 %v1356, 7
    %v1358 = vsub.s32 0, %v1357
    %v1359 = vrot.slane %v1355, %v1358
    %v1360 = vadd.f32 %v1341, %v1359
    %v1361 = vadd.f32 %v1344, %v1359
    %v1362 = vadd.f32 %v1349, %v1359
    %v1363 = vadd.f32 %v1352, %v1359
    %v1364 = vmax.f32 %v1360, 0.0
    %v1365 = vmax.f32 %v1361, 0.0
    %v1366 = vmax.f32 %v1362, 0.0
    %v1367 = vmax.f32 %v1363, 0.0
    %vm1368 = vcmp.lt.s32.totalorder %v23, 24
    %vm1369 = vcmp.lt.s32.totalorder %v24, 24
    %vm1370 = vcmp.lt.s32.totalorder %v25, 24
    %vm1371 = vcmp.lt.s32.totalorder %v26, 24
    %v1372 = vsel %vm1368, 1, 0
    %v1373 = vsel %vm1369, 1, 0
    %v1374 = vsel %vm1370, 1, 0
    %v1375 = vsel %vm1371, 1, 0
    %vm1376 = vcmp.eq.s32.totalorder %v1372, 1
    %vm1377 = vcmp.eq.s32.totalorder %v1373, 1
    %vm1378 = vcmp.eq.s32.totalorder %v1374, 1
    %vm1379 = vcmp.eq.s32.totalorder %v1375, 1
    %v1380 = vsel %vm1376, %v1364, 0.0
    %v1381 = vsel %vm1377, %v1365, 0.0
    %v1382 = vsel %vm1378, %v1366, 0.0
    %v1383 = vsel %vm1379, %v1367, 0.0
    %s1384 = scalar_lea.vmem [#allocation2], 32
    %1385 = vst.msk [vmem:[%s1384] sm:$0xff] %vm57, %v1380
    %1386 = vst.msk [vmem:[%s1384 + $0x8] sm:$0xff] %vm57, %v1381
    %1387 = vst.msk [vmem:[%s1384 + $0x10] sm:$0xff] %vm57, %v1382
    %1388 = vst.msk [vmem:[%s1384 + $0x18] sm:$0xff] %vm57, %v1383
    %s1389 = scalar_lea.vmem %s0, 64
    %v1390 = vld [vmem:[%s1389 + $0x10] sm:$0xf]
    %v1391 = vld [vmem:[%s1389 + $0x14] sm:$0xf]
    %v1392 = vld [vmem:[%s1389 + $0x18] sm:$0xf]
    %v1393 = vld [vmem:[%s1389 + $0x1c] sm:$0xf]
    %s1394 = scalar_lea.vmem %s1, 32
    %v1395 = vld [vmem:[%s1394] sm:$0xf]
    %v1396 = vld [vmem:[%s1394 + $0x4] sm:$0xf]
    %v1397 = vld [vmem:[%s1394 + $0x8] sm:$0xf]
    %v1398 = vld [vmem:[%s1394 + $0xc] sm:$0xf]
    %v1403 = vunpack.c.l.b16 %v1395
    %v1404 = vunpack.c.l.b16 %v1396
    %v1405 = vunpack.c.l.b16 %v1397
    %v1406 = vunpack.c.l.b16 %v1398
    %v1407 = vpack.c.b16 %v1404, %v1403
    %v1408 = vpack.c.b16 %v1406, %v1405
    %v1413 = vunpack.c.l.b16 %v1390
    %v1414 = vunpack.c.l.b16 %v1391
    %v1415 = vunpack.c.l.b16 %v1392
    %v1416 = vunpack.c.l.b16 %v1393
    %v1417 = vpack.c.b16 %v1414, %v1413
    %v1418 = vpack.c.b16 %v1416, %v1415
    %v1422 = vsel %vm57, %v1407, 0
    %v1425 = vsel %vm57, %v1408, 0
    %1427 = vmatprep.subr.bf16.mxu0 0
    %1428 = vmatpush1.bf16.msra.mxu0 %v1417
    %1429 = vmatprep.subr.bf16.mxu0 0
    %1430 = vmatpush1.bf16.msra.mxu0 %v1418
    %1431 = vmatprep.subr.bf16.mxu0 0
    %1432 = vmatpush1.bf16.msra.mxu0 0
    %1433 = vmatprep.subr.bf16.mxu0 0
    %1434 = vmatpush1.bf16.msra.mxu0 0
    %1435 = vmatprep.subr.bf16.mxu0 0
    %1436 = vmatpush1.bf16.msra.mxu0 0
    %1437 = vmatprep.subr.bf16.mxu0 0
    %1438 = vmatpush1.bf16.msra.mxu0 0
    %1439 = vmatprep.subr.bf16.mxu0 0
    %1440 = vmatpush1.bf16.msra.mxu0 0
    %1441 = vmatprep.subr.bf16.mxu0 0
    %1442 = vmatpush1.bf16.msra.mxu0 0
    %1443 = vmatprep.subr.bf16.mxu0 0
    %1444 = vmatpush1.bf16.msra.mxu0 0
    %1445 = vmatprep.subr.bf16.mxu0 0
    %1446 = vmatpush1.bf16.msra.mxu0 0
    %1447 = vmatprep.subr.bf16.mxu0 0
    %1448 = vmatpush1.bf16.msra.mxu0 0
    %1449 = vmatprep.subr.bf16.mxu0 0
    %1450 = vmatpush1.bf16.msra.mxu0 0
    %1451 = vmatprep.subr.bf16.mxu0 0
    %1452 = vmatpush1.bf16.msra.mxu0 0
    %1453 = vmatprep.subr.bf16.mxu0 0
    %1454 = vmatpush1.bf16.msra.mxu0 0
    %1455 = vmatprep.subr.bf16.mxu0 0
    %1456 = vmatpush1.bf16.msra.mxu0 0
    %1457 = vmatprep.subr.bf16.mxu0 0
    %1458 = vmatpush1.bf16.msra.mxu0 0
    %1459 = vmatprep.mubr.bf16.mxu0 0
    %1460 = vmatmul.mubr.bf16.gmra.mrb[0].mxu0 %v1422
    %v1461 = vpop.f32.mrb[0].mxu0
    %v1462 = vadd.f32 0.0, %v1461
    %v1463 = vpop.f32.mrb[0].mxu0
    %v1464 = vpop.f32.mrb[0].mxu0
    %v1465 = vadd.f32 0.0, %v1464
    %v1466 = vpop.f32.mrb[0].mxu0
    %1467 = vmatprep.mubr.bf16.mxu0 0
    %1468 = vmatmul.mubr.bf16.gmra.mrb[0].mxu0 %v1425
    %v1469 = vpop.f32.mrb[0].mxu0
    %v1470 = vadd.f32 0.0, %v1469
    %v1471 = vpop.f32.mrb[0].mxu0
    %v1472 = vpop.f32.mrb[0].mxu0
    %v1473 = vadd.f32 0.0, %v1472
    %v1474 = vpop.f32.mrb[0].mxu0
    %1475 = vdwg.mxu0
    %s1476 = scalar_lea.vmem %s2, 32
    %v1477 = vld [vmem:[%s1476] sm:$0xf]
    %v1478 = vld [vmem:[%s1476 + $0x4] sm:$0xf]
    %v1479 = vld [vmem:[%s1476 + $0x8] sm:$0xf]
    %v1480 = vld [vmem:[%s1476 + $0xc] sm:$0xf]
    %v1481 = vld [vmem:[%s1389] sm:$0xf]
    %v1482 = vld [vmem:[%s1389 + $0x4] sm:$0xf]
    %v1483 = vld [vmem:[%s1389 + $0x8] sm:$0xf]
    %v1484 = vld [vmem:[%s1389 + $0xc] sm:$0xf]
    %v1489 = vunpack.c.l.b16 %v1477
    %v1490 = vunpack.c.l.b16 %v1478
    %v1491 = vunpack.c.l.b16 %v1479
    %v1492 = vunpack.c.l.b16 %v1480
    %v1493 = vpack.c.b16 %v1490, %v1489
    %v1494 = vpack.c.b16 %v1492, %v1491
    %v1499 = vunpack.c.l.b16 %v1481
    %v1500 = vunpack.c.l.b16 %v1482
    %v1501 = vunpack.c.l.b16 %v1483
    %v1502 = vunpack.c.l.b16 %v1484
    %v1503 = vpack.c.b16 %v1500, %v1499
    %v1504 = vpack.c.b16 %v1502, %v1501
    %v1508 = vsel %vm143, %v1493, 0
    %v1511 = vsel %vm143, %v1494, 0
    %1513 = vmatprep.subr.bf16.mxu0 0
    %1514 = vmatpush1.bf16.msra.mxu0 %v1503
    %1515 = vmatprep.subr.bf16.mxu0 0
    %1516 = vmatpush1.bf16.msra.mxu0 %v1504
    %1517 = vmatprep.subr.bf16.mxu0 0
    %1518 = vmatpush1.bf16.msra.mxu0 %v1417
    %1519 = vmatprep.subr.bf16.mxu0 0
    %1520 = vmatpush1.bf16.msra.mxu0 %v1418
    %1521 = vmatprep.subr.bf16.mxu0 0
    %1522 = vmatpush1.bf16.msra.mxu0 0
    %1523 = vmatprep.subr.bf16.mxu0 0
    %1524 = vmatpush1.bf16.msra.mxu0 0
    %1525 = vmatprep.subr.bf16.mxu0 0
    %1526 = vmatpush1.bf16.msra.mxu0 0
    %1527 = vmatprep.subr.bf16.mxu0 0
    %1528 = vmatpush1.bf16.msra.mxu0 0
    %1529 = vmatprep.subr.bf16.mxu0 0
    %1530 = vmatpush1.bf16.msra.mxu0 0
    %1531 = vmatprep.subr.bf16.mxu0 0
    %1532 = vmatpush1.bf16.msra.mxu0 0
    %1533 = vmatprep.subr.bf16.mxu0 0
    %1534 = vmatpush1.bf16.msra.mxu0 0
    %1535 = vmatprep.subr.bf16.mxu0 0
    %1536 = vmatpush1.bf16.msra.mxu0 0
    %1537 = vmatprep.subr.bf16.mxu0 0
    %1538 = vmatpush1.bf16.msra.mxu0 0
    %1539 = vmatprep.subr.bf16.mxu0 0
    %1540 = vmatpush1.bf16.msra.mxu0 0
    %1541 = vmatprep.subr.bf16.mxu0 0
    %1542 = vmatpush1.bf16.msra.mxu0 0
    %1543 = vmatprep.subr.bf16.mxu0 0
    %1544 = vmatpush1.bf16.msra.mxu0 0
    %1545 = vmatprep.mubr.bf16.mxu0 0
    %1546 = vmatmul.mubr.bf16.gmra.mrb[0].mxu0 %v1508
    %v1547 = vpop.f32.mrb[0].mxu0
    %v1548 = vadd.f32 0.0, %v1547
    %v1549 = vpop.f32.mrb[0].mxu0
    %v1550 = vpop.f32.mrb[0].mxu0
    %v1551 = vadd.f32 0.0, %v1550
    %v1552 = vpop.f32.mrb[0].mxu0
    %1553 = vmatprep.mubr.bf16.mxu0 0
    %1554 = vmatmul.mubr.bf16.gmra.mrb[0].mxu0 %v1511
    %v1555 = vpop.f32.mrb[0].mxu0
    %v1556 = vadd.f32 0.0, %v1555
    %v1557 = vpop.f32.mrb[0].mxu0
    %v1558 = vpop.f32.mrb[0].mxu0
    %v1559 = vadd.f32 0.0, %v1558
    %v1560 = vpop.f32.mrb[0].mxu0
    %1561 = vdwg.mxu0
    %v1562 = vpack.c.bf16 %v1465, %v1462
    %v1563 = vpack.c.bf16 %v1473, %v1470
    %s1564 = scalar_lea.vmem %s3, 192
    %v1565 = vld [vmem:[%s1564] sm:$0xf]
    %v1566 = vld [vmem:[%s1564 + $0x4] sm:$0xf]
    %v1567 = vld [vmem:[%s1564 + $0x8] sm:$0xf]
    %v1568 = vld [vmem:[%s1564 + $0xc] sm:$0xf]
    %s1569 = scalar_lea.vmem %s4, 16
    %v1570 = vld [vmem:[%s1569] sm:$0x1]
    %v1571 = vlaneseq
    %v1572 = vshrl.u32 %v1571, 7
    %v1573 = vsub.s32 0, %v1572
    %v1574 = vrot.slane %v1570, %v1573
    %v1579 = vunpack.c.l.b16 %v1565
    %v1580 = vunpack.c.l.b16 %v1566
    %v1581 = vunpack.c.l.b16 %v1567
    %v1582 = vunpack.c.l.b16 %v1568
    %v1583 = vpack.c.b16 %v1580, %v1579
    %v1584 = vpack.c.b16 %v1582, %v1581
    %v1588 = vsel %vm57, %v1562, 0
    %v1591 = vsel %vm57, %v1563, 0
    %1593 = vmatprep.subr.bf16.mxu0 0
    %1594 = vmatpush1.bf16.msra.mxu0 %v1583
    %1595 = vmatprep.subr.bf16.mxu0 0
    %1596 = vmatpush1.bf16.msra.mxu0 %v1584
    %1597 = vmatprep.subr.bf16.mxu0 0
    %1598 = vmatpush1.bf16.msra.mxu0 0
    %1599 = vmatprep.subr.bf16.mxu0 0
    %1600 = vmatpush1.bf16.msra.mxu0 0
    %1601 = vmatprep.subr.bf16.mxu0 0
    %1602 = vmatpush1.bf16.msra.mxu0 0
    %1603 = vmatprep.subr.bf16.mxu0 0
    %1604 = vmatpush1.bf16.msra.mxu0 0
    %1605 = vmatprep.subr.bf16.mxu0 0
    %1606 = vmatpush1.bf16.msra.mxu0 0
    %1607 = vmatprep.subr.bf16.mxu0 0
    %1608 = vmatpush1.bf16.msra.mxu0 0
    %1609 = vmatprep.subr.bf16.mxu0 0
    %1610 = vmatpush1.bf16.msra.mxu0 0
    %1611 = vmatprep.subr.bf16.mxu0 0
    %1612 = vmatpush1.bf16.msra.mxu0 0
    %1613 = vmatprep.subr.bf16.mxu0 0
    %1614 = vmatpush1.bf16.msra.mxu0 0
    %1615 = vmatprep.subr.bf16.mxu0 0
    %1616 = vmatpush1.bf16.msra.mxu0 0
    %1617 = vmatprep.subr.bf16.mxu0 0
    %1618 = vmatpush1.bf16.msra.mxu0 0
    %1619 = vmatprep.subr.bf16.mxu0 0
    %1620 = vmatpush1.bf16.msra.mxu0 0
    %1621 = vmatprep.subr.bf16.mxu0 0
    %1622 = vmatpush1.bf16.msra.mxu0 0
    %1623 = vmatprep.subr.bf16.mxu0 0
    %1624 = vmatpush1.bf16.msra.mxu0 0
    %1625 = vmatprep.mubr.bf16.mxu0 0
    %1626 = vmatmul.mubr.bf16.gmra.mrb[0].mxu0 %v1588
    %v1627 = vpop.f32.mrb[0].mxu0
    %v1628 = vadd.f32 %v1574, %v1627
    %v1629 = vpop.f32.mrb[0].mxu0
    %v1630 = vpop.f32.mrb[0].mxu0
    %v1631 = vadd.f32 %v1574, %v1630
    %v1632 = vpop.f32.mrb[0].mxu0
    %1633 = vmatprep.mubr.bf16.mxu0 0
    %1634 = vmatmul.mubr.bf16.gmra.mrb[0].mxu0 %v1591
    %v1635 = vpop.f32.mrb[0].mxu0
    %v1636 = vadd.f32 %v1574, %v1635
    %v1637 = vpop.f32.mrb[0].mxu0
    %v1638 = vpop.f32.mrb[0].mxu0
    %v1639 = vadd.f32 %v1574, %v1638
    %v1640 = vpop.f32.mrb[0].mxu0
    %1641 = vdwg.mxu0
    %v1642 = vmax.f32 %v1628, 0.0
    %v1643 = vmax.f32 %v1631, 0.0
    %v1644 = vmax.f32 %v1636, 0.0
    %v1645 = vmax.f32 %v1639, 0.0
    %v1646 = vpack.c.bf16 %v1643, %v1642
    %v1647 = vpack.c.bf16 %v1645, %v1644
    %v1648 = vld [vmem:[%s1564 + $0x10] sm:$0xf]
    %v1649 = vld [vmem:[%s1564 + $0x14] sm:$0xf]
    %v1650 = vld [vmem:[%s1564 + $0x18] sm:$0xf]
    %v1651 = vld [vmem:[%s1564 + $0x1c] sm:$0xf]
    %v1652 = vld [vmem:[%s1569 + $0x1] sm:$0x1]
    %v1653 = vlaneseq
    %v1654 = vshrl.u32 %v1653, 7
    %v1655 = vsub.s32 0, %v1654
    %v1656 = vrot.slane %v1652, %v1655
    %v1661 = vunpack.c.l.b16 %v1648
    %v1662 = vunpack.c.l.b16 %v1649
    %v1663 = vunpack.c.l.b16 %v1650
    %v1664 = vunpack.c.l.b16 %v1651
    %v1665 = vpack.c.b16 %v1662, %v1661
    %v1666 = vpack.c.b16 %v1664, %v1663
    %v1670 = vsel %vm57, %v1646, 0
    %v1673 = vsel %vm57, %v1647, 0
    %1675 = vmatprep.subr.bf16.mxu0 0
    %1676 = vmatpush1.bf16.msra.mxu0 %v1665
    %1677 = vmatprep.subr.bf16.mxu0 0
    %1678 = vmatpush1.bf16.msra.mxu0 %v1666
    %1679 = vmatprep.subr.bf16.mxu0 0
    %1680 = vmatpush1.bf16.msra.mxu0 0
    %1681 = vmatprep.subr.bf16.mxu0 0
    %1682 = vmatpush1.bf16.msra.mxu0 0
    %1683 = vmatprep.subr.bf16.mxu0 0
    %1684 = vmatpush1.bf16.msra.mxu0 0
    %1685 = vmatprep.subr.bf16.mxu0 0
    %1686 = vmatpush1.bf16.msra.mxu0 0
    %1687 = vmatprep.subr.bf16.mxu0 0
    %1688 = vmatpush1.bf16.msra.mxu0 0
    %1689 = vmatprep.subr.bf16.mxu0 0
    %1690 = vmatpush1.bf16.msra.mxu0 0
    %1691 = vmatprep.subr.bf16.mxu0 0
    %1692 = vmatpush1.bf16.msra.mxu0 0
    %1693 = vmatprep.subr.bf16.mxu0 0
    %1694 = vmatpush1.bf16.msra.mxu0 0
    %1695 = vmatprep.subr.bf16.mxu0 0
    %1696 = vmatpush1.bf16.msra.mxu0 0
    %1697 = vmatprep.subr.bf16.mxu0 0
    %1698 = vmatpush1.bf16.msra.mxu0 0
    %1699 = vmatprep.subr.bf16.mxu0 0
    %1700 = vmatpush1.bf16.msra.mxu0 0
    %1701 = vmatprep.subr.bf16.mxu0 0
    %1702 = vmatpush1.bf16.msra.mxu0 0
    %1703 = vmatprep.subr.bf16.mxu0 0
    %1704 = vmatpush1.bf16.msra.mxu0 0
    %1705 = vmatprep.subr.bf16.mxu0 0
    %1706 = vmatpush1.bf16.msra.mxu0 0
    %1707 = vmatprep.mubr.bf16.mxu0 0
    %1708 = vmatmul.mubr.bf16.gmra.mrb[0].mxu0 %v1670
    %v1709 = vpop.f32.mrb[0].mxu0
    %v1710 = vadd.f32 %v1656, %v1709
    %v1711 = vpop.f32.mrb[0].mxu0
    %v1712 = vpop.f32.mrb[0].mxu0
    %v1713 = vadd.f32 %v1656, %v1712
    %v1714 = vpop.f32.mrb[0].mxu0
    %1715 = vmatprep.mubr.bf16.mxu0 0
    %1716 = vmatmul.mubr.bf16.gmra.mrb[0].mxu0 %v1673
    %v1717 = vpop.f32.mrb[0].mxu0
    %v1718 = vadd.f32 %v1656, %v1717
    %v1719 = vpop.f32.mrb[0].mxu0
    %v1720 = vpop.f32.mrb[0].mxu0
    %v1721 = vadd.f32 %v1656, %v1720
    %v1722 = vpop.f32.mrb[0].mxu0
    %1723 = vdwg.mxu0
    %v1724 = vmax.f32 %v1710, 0.0
    %v1725 = vmax.f32 %v1713, 0.0
    %v1726 = vmax.f32 %v1718, 0.0
    %v1727 = vmax.f32 %v1721, 0.0
    %v1728 = vpack.c.bf16 %v1551, %v1548
    %v1729 = vpack.c.bf16 %v1559, %v1556
    %v1730 = vld [vmem:[%s1564 + $0x20] sm:$0xf]
    %v1731 = vld [vmem:[%s1564 + $0x24] sm:$0xf]
    %v1732 = vld [vmem:[%s1564 + $0x28] sm:$0xf]
    %v1733 = vld [vmem:[%s1564 + $0x2c] sm:$0xf]
    %v1734 = vld [vmem:[%s1569 + $0x2] sm:$0x1]
    %v1735 = vlaneseq
    %v1736 = vshrl.u32 %v1735, 7
    %v1737 = vsub.s32 0, %v1736
    %v1738 = vrot.slane %v1734, %v1737
    %v1743 = vunpack.c.l.b16 %v1730
    %v1744 = vunpack.c.l.b16 %v1731
    %v1745 = vunpack.c.l.b16 %v1732
    %v1746 = vunpack.c.l.b16 %v1733
    %v1747 = vpack.c.b16 %v1744, %v1743
    %v1748 = vpack.c.b16 %v1746, %v1745
    %v1752 = vsel %vm57, %v1728, 0
    %v1755 = vsel %vm57, %v1729, 0
    %1757 = vmatprep.subr.bf16.mxu0 0
    %1758 = vmatpush1.bf16.msra.mxu0 %v1747
    %1759 = vmatprep.subr.bf16.mxu0 0
    %1760 = vmatpush1.bf16.msra.mxu0 %v1748
    %1761 = vmatprep.subr.bf16.mxu0 0
    %1762 = vmatpush1.bf16.msra.mxu0 0
    %1763 = vmatprep.subr.bf16.mxu0 0
    %1764 = vmatpush1.bf16.msra.mxu0 0
    %1765 = vmatprep.subr.bf16.mxu0 0
    %1766 = vmatpush1.bf16.msra.mxu0 0
    %1767 = vmatprep.subr.bf16.mxu0 0
    %1768 = vmatpush1.bf16.msra.mxu0 0
    %1769 = vmatprep.subr.bf16.mxu0 0
    %1770 = vmatpush1.bf16.msra.mxu0 0
    %1771 = vmatprep.subr.bf16.mxu0 0
    %1772 = vmatpush1.bf16.msra.mxu0 0
    %1773 = vmatprep.subr.bf16.mxu0 0
    %1774 = vmatpush1.bf16.msra.mxu0 0
    %1775 = vmatprep.subr.bf16.mxu0 0
    %1776 = vmatpush1.bf16.msra.mxu0 0
    %1777 = vmatprep.subr.bf16.mxu0 0
    %1778 = vmatpush1.bf16.msra.mxu0 0
    %1779 = vmatprep.subr.bf16.mxu0 0
    %1780 = vmatpush1.bf16.msra.mxu0 0
    %1781 = vmatprep.subr.bf16.mxu0 0
    %1782 = vmatpush1.bf16.msra.mxu0 0
    %1783 = vmatprep.subr.bf16.mxu0 0
    %1784 = vmatpush1.bf16.msra.mxu0 0
    %1785 = vmatprep.subr.bf16.mxu0 0
    %1786 = vmatpush1.bf16.msra.mxu0 0
    %1787 = vmatprep.subr.bf16.mxu0 0
    %1788 = vmatpush1.bf16.msra.mxu0 0
    %1789 = vmatprep.mubr.bf16.mxu0 0
    %1790 = vmatmul.mubr.bf16.gmra.mrb[0].mxu0 %v1752
    %v1791 = vpop.f32.mrb[0].mxu0
    %v1792 = vadd.f32 %v1738, %v1791
    %v1793 = vpop.f32.mrb[0].mxu0
    %v1794 = vpop.f32.mrb[0].mxu0
    %v1795 = vadd.f32 %v1738, %v1794
    %v1796 = vpop.f32.mrb[0].mxu0
    %1797 = vmatprep.mubr.bf16.mxu0 0
    %1798 = vmatmul.mubr.bf16.gmra.mrb[0].mxu0 %v1755
    %v1799 = vpop.f32.mrb[0].mxu0
    %v1800 = vadd.f32 %v1738, %v1799
    %v1801 = vpop.f32.mrb[0].mxu0
    %v1802 = vpop.f32.mrb[0].mxu0
    %v1803 = vadd.f32 %v1738, %v1802
    %v1804 = vpop.f32.mrb[0].mxu0
    %1805 = vdwg.mxu0
    %v1806 = vmax.f32 %v1792, 0.0
    %v1807 = vmax.f32 %v1795, 0.0
    %v1808 = vmax.f32 %v1800, 0.0
    %v1809 = vmax.f32 %v1803, 0.0
    %v1810 = vpack.c.bf16 %v1807, %v1806
    %v1811 = vpack.c.bf16 %v1809, %v1808
    %v1812 = vld [vmem:[%s1564 + $0x30] sm:$0xf]
    %v1813 = vld [vmem:[%s1564 + $0x34] sm:$0xf]
    %v1814 = vld [vmem:[%s1564 + $0x38] sm:$0xf]
    %v1815 = vld [vmem:[%s1564 + $0x3c] sm:$0xf]
    %v1816 = vld [vmem:[%s1569 + $0x3] sm:$0x1]
    %v1817 = vlaneseq
    %v1818 = vshrl.u32 %v1817, 7
    %v1819 = vsub.s32 0, %v1818
    %v1820 = vrot.slane %v1816, %v1819
    %v1825 = vunpack.c.l.b16 %v1812
    %v1826 = vunpack.c.l.b16 %v1813
    %v1827 = vunpack.c.l.b16 %v1814
    %v1828 = vunpack.c.l.b16 %v1815
    %v1829 = vpack.c.b16 %v1826, %v1825
    %v1830 = vpack.c.b16 %v1828, %v1827
    %v1834 = vsel %vm57, %v1810, 0
    %v1837 = vsel %vm57, %v1811, 0
    %1839 = vmatprep.subr.bf16.mxu0 0
    %1840 = vmatpush1.bf16.msra.mxu0 %v1829
    %1841 = vmatprep.subr.bf16.mxu0 0
    %1842 = vmatpush1.bf16.msra.mxu0 %v1830
    %1843 = vmatprep.subr.bf16.mxu0 0
    %1844 = vmatpush1.bf16.msra.mxu0 0
    %1845 = vmatprep.subr.bf16.mxu0 0
    %1846 = vmatpush1.bf16.msra.mxu0 0
    %1847 = vmatprep.subr.bf16.mxu0 0
    %1848 = vmatpush1.bf16.msra.mxu0 0
    %1849 = vmatprep.subr.bf16.mxu0 0
    %1850 = vmatpush1.bf16.msra.mxu0 0
    %1851 = vmatprep.subr.bf16.mxu0 0
    %1852 = vmatpush1.bf16.msra.mxu0 0
    %1853 = vmatprep.subr.bf16.mxu0 0
    %1854 = vmatpush1.bf16.msra.mxu0 0
    %1855 = vmatprep.subr.bf16.mxu0 0
    %1856 = vmatpush1.bf16.msra.mxu0 0
    %1857 = vmatprep.subr.bf16.mxu0 0
    %1858 = vmatpush1.bf16.msra.mxu0 0
    %1859 = vmatprep.subr.bf16.mxu0 0
    %1860 = vmatpush1.bf16.msra.mxu0 0
    %1861 = vmatprep.subr.bf16.mxu0 0
    %1862 = vmatpush1.bf16.msra.mxu0 0
    %1863 = vmatprep.subr.bf16.mxu0 0
    %1864 = vmatpush1.bf16.msra.mxu0 0
    %1865 = vmatprep.subr.bf16.mxu0 0
    %1866 = vmatpush1.bf16.msra.mxu0 0
    %1867 = vmatprep.subr.bf16.mxu0 0
    %1868 = vmatpush1.bf16.msra.mxu0 0
    %1869 = vmatprep.subr.bf16.mxu0 0
    %1870 = vmatpush1.bf16.msra.mxu0 0
    %1871 = vmatprep.mubr.bf16.mxu0 0
    %1872 = vmatmul.mubr.bf16.gmra.mrb[0].mxu0 %v1834
    %v1873 = vpop.f32.mrb[0].mxu0
    %v1874 = vadd.f32 %v1820, %v1873
    %v1875 = vpop.f32.mrb[0].mxu0
    %v1876 = vpop.f32.mrb[0].mxu0
    %v1877 = vadd.f32 %v1820, %v1876
    %v1878 = vpop.f32.mrb[0].mxu0
    %1879 = vmatprep.mubr.bf16.mxu0 0
    %1880 = vmatmul.mubr.bf16.gmra.mrb[0].mxu0 %v1837
    %v1881 = vpop.f32.mrb[0].mxu0
    %v1882 = vadd.f32 %v1820, %v1881
    %v1883 = vpop.f32.mrb[0].mxu0
    %v1884 = vpop.f32.mrb[0].mxu0
    %v1885 = vadd.f32 %v1820, %v1884
    %v1886 = vpop.f32.mrb[0].mxu0
    %1887 = vdwg.mxu0
    %v1888 = vmax.f32 %v1874, 0.0
    %v1889 = vmax.f32 %v1877, 0.0
    %v1890 = vmax.f32 %v1882, 0.0
    %v1891 = vmax.f32 %v1885, 0.0
    %v1892 = vpack.c.bf16 %v1725, %v1724
    %v1893 = vpack.c.bf16 %v1727, %v1726
    %v1894 = vld [vmem:[%s1564 + $0x40] sm:$0xf]
    %v1895 = vld [vmem:[%s1564 + $0x44] sm:$0xf]
    %v1896 = vld [vmem:[%s1564 + $0x48] sm:$0xf]
    %v1897 = vld [vmem:[%s1564 + $0x4c] sm:$0xf]
    %v1898 = vpack.c.bf16 %v1889, %v1888
    %v1899 = vpack.c.bf16 %v1891, %v1890
    %v1900 = vld [vmem:[%s1564 + $0x50] sm:$0xf]
    %v1901 = vld [vmem:[%s1564 + $0x54] sm:$0xf]
    %v1902 = vld [vmem:[%s1564 + $0x58] sm:$0xf]
    %v1903 = vld [vmem:[%s1564 + $0x5c] sm:$0xf]
    %v1908 = vunpack.c.l.b16 %v1900
    %v1909 = vunpack.c.l.b16 %v1901
    %v1910 = vunpack.c.l.b16 %v1902
    %v1911 = vunpack.c.l.b16 %v1903
    %v1912 = vpack.c.b16 %v1909, %v1908
    %v1913 = vpack.c.b16 %v1911, %v1910
    %v1917 = vsel %vm57, %v1898, 0
    %v1920 = vsel %vm57, %v1899, 0
    %1922 = vmatprep.subr.bf16.mxu0 0
    %1923 = vmatpush1.bf16.msra.mxu0 %v1912
    %1924 = vmatprep.subr.bf16.mxu0 0
    %1925 = vmatpush1.bf16.msra.mxu0 %v1913
    %1926 = vmatprep.subr.bf16.mxu0 0
    %1927 = vmatpush1.bf16.msra.mxu0 0
    %1928 = vmatprep.subr.bf16.mxu0 0
    %1929 = vmatpush1.bf16.msra.mxu0 0
    %1930 = vmatprep.subr.bf16.mxu0 0
    %1931 = vmatpush1.bf16.msra.mxu0 0
    %1932 = vmatprep.subr.bf16.mxu0 0
    %1933 = vmatpush1.bf16.msra.mxu0 0
    %1934 = vmatprep.subr.bf16.mxu0 0
    %1935 = vmatpush1.bf16.msra.mxu0 0
    %1936 = vmatprep.subr.bf16.mxu0 0
    %1937 = vmatpush1.bf16.msra.mxu0 0
    %1938 = vmatprep.subr.bf16.mxu0 0
    %1939 = vmatpush1.bf16.msra.mxu0 0
    %1940 = vmatprep.subr.bf16.mxu0 0
    %1941 = vmatpush1.bf16.msra.mxu0 0
    %1942 = vmatprep.subr.bf16.mxu0 0
    %1943 = vmatpush1.bf16.msra.mxu0 0
    %1944 = vmatprep.subr.bf16.mxu0 0
    %1945 = vmatpush1.bf16.msra.mxu0 0
    %1946 = vmatprep.subr.bf16.mxu0 0
    %1947 = vmatpush1.bf16.msra.mxu0 0
    %1948 = vmatprep.subr.bf16.mxu0 0
    %1949 = vmatpush1.bf16.msra.mxu0 0
    %1950 = vmatprep.subr.bf16.mxu0 0
    %1951 = vmatpush1.bf16.msra.mxu0 0
    %1952 = vmatprep.subr.bf16.mxu0 0
    %1953 = vmatpush1.bf16.msra.mxu0 0
    %1954 = vmatprep.mubr.bf16.mxu0 0
    %1955 = vmatmul.mubr.bf16.gmra.mrb[0].mxu0 %v1917
    %v1956 = vpop.f32.mrb[0].mxu0
    %v1957 = vadd.f32 0.0, %v1956
    %v1958 = vpop.f32.mrb[0].mxu0
    %v1959 = vpop.f32.mrb[0].mxu0
    %v1960 = vadd.f32 0.0, %v1959
    %v1961 = vpop.f32.mrb[0].mxu0
    %1962 = vmatprep.mubr.bf16.mxu0 0
    %1963 = vmatmul.mubr.bf16.gmra.mrb[0].mxu0 %v1920
    %v1964 = vpop.f32.mrb[0].mxu0
    %v1965 = vadd.f32 0.0, %v1964
    %v1966 = vpop.f32.mrb[0].mxu0
    %v1967 = vpop.f32.mrb[0].mxu0
    %v1968 = vadd.f32 0.0, %v1967
    %v1969 = vpop.f32.mrb[0].mxu0
    %1970 = vdwg.mxu0
    %v1975 = vunpack.c.l.b16 %v1894
    %v1976 = vunpack.c.l.b16 %v1895
    %v1977 = vunpack.c.l.b16 %v1896
    %v1978 = vunpack.c.l.b16 %v1897
    %v1979 = vpack.c.b16 %v1976, %v1975
    %v1980 = vpack.c.b16 %v1978, %v1977
    %v1984 = vsel %vm57, %v1892, 0
    %v1987 = vsel %vm57, %v1893, 0
    %1989 = vmatprep.subr.bf16.mxu0 0
    %1990 = vmatpush1.bf16.msra.mxu0 %v1979
    %1991 = vmatprep.subr.bf16.mxu0 0
    %1992 = vmatpush1.bf16.msra.mxu0 %v1980
    %1993 = vmatprep.subr.bf16.mxu0 0
    %1994 = vmatpush1.bf16.msra.mxu0 0
    %1995 = vmatprep.subr.bf16.mxu0 0
    %1996 = vmatpush1.bf16.msra.mxu0 0
    %1997 = vmatprep.subr.bf16.mxu0 0
    %1998 = vmatpush1.bf16.msra.mxu0 0
    %1999 = vmatprep.subr.bf16.mxu0 0
    %2000 = vmatpush1.bf16.msra.mxu0 0
    %2001 = vmatprep.subr.bf16.mxu0 0
    %2002 = vmatpush1.bf16.msra.mxu0 0
    %2003 = vmatprep.subr.bf16.mxu0 0
    %2004 = vmatpush1.bf16.msra.mxu0 0
    %2005 = vmatprep.subr.bf16.mxu0 0
    %2006 = vmatpush1.bf16.msra.mxu0 0
    %2007 = vmatprep.subr.bf16.mxu0 0
    %2008 = vmatpush1.bf16.msra.mxu0 0
    %2009 = vmatprep.subr.bf16.mxu0 0
    %2010 = vmatpush1.bf16.msra.mxu0 0
    %2011 = vmatprep.subr.bf16.mxu0 0
    %2012 = vmatpush1.bf16.msra.mxu0 0
    %2013 = vmatprep.subr.bf16.mxu0 0
    %2014 = vmatpush1.bf16.msra.mxu0 0
    %2015 = vmatprep.subr.bf16.mxu0 0
    %2016 = vmatpush1.bf16.msra.mxu0 0
    %2017 = vmatprep.subr.bf16.mxu0 0
    %2018 = vmatpush1.bf16.msra.mxu0 0
    %2019 = vmatprep.subr.bf16.mxu0 0
    %2020 = vmatpush1.bf16.msra.mxu0 0
    %2021 = vmatprep.mubr.bf16.mxu0 0
    %2022 = vmatmul.mubr.bf16.gmra.mrb[0].mxu0 %v1984
    %v2023 = vpop.f32.mrb[0].mxu0
    %v2024 = vadd.f32 %v1957, %v2023
    %v2025 = vpop.f32.mrb[0].mxu0
    %v2026 = vpop.f32.mrb[0].mxu0
    %v2027 = vadd.f32 %v1960, %v2026
    %v2028 = vpop.f32.mrb[0].mxu0
    %2029 = vmatprep.mubr.bf16.mxu0 0
    %2030 = vmatmul.mubr.bf16.gmra.mrb[0].mxu0 %v1987
    %v2031 = vpop.f32.mrb[0].mxu0
    %v2032 = vadd.f32 %v1965, %v2031
    %v2033 = vpop.f32.mrb[0].mxu0
    %v2034 = vpop.f32.mrb[0].mxu0
    %v2035 = vadd.f32 %v1968, %v2034
    %v2036 = vpop.f32.mrb[0].mxu0
    %2037 = vdwg.mxu0
    %v2038 = vld [vmem:[%s1569 + $0x4] sm:$0x1]
    %v2039 = vlaneseq
    %v2040 = vshrl.u32 %v2039, 7
    %v2041 = vsub.s32 0, %v2040
    %v2042 = vrot.slane %v2038, %v2041
    %v2043 = vadd.f32 %v2024, %v2042
    %v2044 = vadd.f32 %v2027, %v2042
    %v2045 = vadd.f32 %v2032, %v2042
    %v2046 = vadd.f32 %v2035, %v2042
    %v2047 = vmax.f32 %v2043, 0.0
    %v2048 = vmax.f32 %v2044, 0.0
    %v2049 = vmax.f32 %v2045, 0.0
    %v2050 = vmax.f32 %v2046, 0.0
    %vm2051 = vcmp.lt.s32.totalorder %v23, 12
    %vm2052 = vcmp.lt.s32.totalorder %v24, 12
    %vm2053 = vcmp.lt.s32.totalorder %v25, 12
    %vm2054 = vcmp.lt.s32.totalorder %v26, 12
    %v2055 = vsel %vm2051, 1, 0
    %v2056 = vsel %vm2052, 1, 0
    %v2057 = vsel %vm2053, 1, 0
    %v2058 = vsel %vm2054, 1, 0
    %vm2059 = vcmp.eq.s32.totalorder %v2055, 1
    %vm2060 = vcmp.eq.s32.totalorder %v2056, 1
    %vm2061 = vcmp.eq.s32.totalorder %v2057, 1
    %vm2062 = vcmp.eq.s32.totalorder %v2058, 1
    %v2063 = vsel %vm2059, %v2047, 0.0
    %v2064 = vsel %vm2060, %v2048, 0.0
    %v2065 = vsel %vm2061, %v2049, 0.0
    %v2066 = vsel %vm2062, %v2050, 0.0
    %s2067 = scalar_lea.vmem [#allocation2], 64
    %2068 = vst.msk [vmem:[%s2067] sm:$0xff] %vm57, %v2063
    %2069 = vst.msk [vmem:[%s2067 + $0x8] sm:$0xff] %vm57, %v2064
    %2070 = vst.msk [vmem:[%s2067 + $0x10] sm:$0xff] %vm57, %v2065
    %2071 = vst.msk [vmem:[%s2067 + $0x18] sm:$0xff] %vm57, %v2066
    // Predicated region
    $region22: #{tpu_custom_call.1} parent=1 // pred_check
      _
    $region23: #{tpu_custom_call.1} parent=1 // pred_check_branch
      %2073 = sbr.rel (0) target = $region25
    $region24: #{tpu_custom_call.1} parent=1 // pred_region
      %s2075 = ssub.s32 1536, 1536
      %2076 = vsyncadd [#allocation3], %s2075
      %s2077 = sshll.u32 [#allocation2], 4
      %s2078 = int_to_ptr.vmem [resolvable:$true] %s2077
      %2083 = dma.vmem_to_hbm [thread:$0]  %s2078, 1536, %s5, [#allocation3], 128, 128, 8
    $region25: #{tpu_custom_call.1} parent=1 // pred_fallthru
      _
    // Predicated region
    $region26: #{tpu_custom_call.1} parent=1 // pred_check
      _
    $region27: #{tpu_custom_call.1} parent=1 // pred_check_branch
      %2085 = sbr.rel (0) target = $region29
    $region28: #{tpu_custom_call.1} parent=1 // pred_region
      %2086 = dma.done [#allocation3], 1536
    $region29: #{tpu_custom_call.1} parent=1 // pred_fallthru
      _
    %2087 = vsyncpa [#allocation3], 1

</llo_original>
